<compile_context>
chip_gen: v7x
topology: tpu7x:2x2x1
jax: 0.10.0
libtpu: 0.0.40
codegen_flags: <defaults>
</compile_context>

<pallas_src>
import functools

import jax
import jax.numpy as jnp
import numpy as np
from jax.experimental import pallas as pl
from jax.experimental.pallas import tpu as pltpu


# ---------------------------------------------------------------------------
# Host-side (numpy) constant builders.
# ---------------------------------------------------------------------------
def _interp_matrix(src, dst):
    """(dst, src) matrix M s.t. M @ x == 1-D bilinear resize, align_corners=False
    (PyTorch F.interpolate default semantics, incl. edge clamping)."""
    scale = src / dst
    d = np.arange(dst, dtype=np.float64)
    s = (d + 0.5) * scale - 0.5
    s = np.maximum(s, 0.0)                       # PyTorch clamps negative coords to 0
    lo = np.minimum(np.floor(s).astype(np.int64), src - 1)
    hi = np.minimum(lo + 1, src - 1)
    frac = s - lo
    m = np.zeros((dst, src), dtype=np.float32)
    m[np.arange(dst), lo] += (1.0 - frac).astype(np.float32)
    m[np.arange(dst), hi] += frac.astype(np.float32)
    return m


def _mean_resize_matrices(ci, hi, wi, H, W, pad):
    """Constants for one input scale.

    A   (H+2*pad, ci*hi): row-interp matrix with the channel mean (1/ci) folded in
        (tiled ci times along the contraction) and `pad` zero rows top/bottom so the
        matmul output is already vertically zero-padded for the conv.
    MWT (wi, W): transposed column-interp matrix.
    """
    mh = _interp_matrix(hi, H)                   # (H, hi)
    mw = _interp_matrix(wi, W)                   # (W, wi)
    a = np.zeros((H + 2 * pad, ci * hi), dtype=np.float32)
    for c in range(ci):
        a[pad:pad + H, c * hi:(c + 1) * hi] = mh / ci
    return a, np.ascontiguousarray(mw.T).astype(np.float32)


def _banded_conv_weight(conv_w, W, dtype):
    """conv_w: (1, L, KH, KW) -> (KH, L*W, W) banded matrices.

    The KW horizontal taps (and the implicit horizontal zero padding) are folded into
    one matmul contraction, and the L scales are concatenated along the contraction
    rows, so the whole 7x7 conv runs as KH matmuls of (H, L*W) @ (L*W, W)."""
    _, L, KH, KW = conv_w.shape
    pad = (KW - 1) // 2
    sel = np.zeros((KW, W, W), dtype=np.float32)
    for kw in range(KW):
        for w in range(W):
            wp = w + kw - pad
            if 0 <= wp < W:
                sel[kw, wp, w] = 1.0
    band = jnp.einsum("ihk,kpw->hipw", conv_w[0], jnp.asarray(sel))   # (KH, L, W, W)
    return band.reshape(KH, L * W, W).astype(dtype)


def _pick_tb(N):
    """Largest batch block TB dividing N with grid length >= 2 (keeps both v7x
    TensorCores busy under dimension_semantics=('parallel',)). On single-TC chips
    (v5e/v6e) pass batch_block=N to use a grid of 1."""
    for tb in range(max(N // 2, 1), 0, -1):
        if N % tb == 0:
            return tb
    return 1


# ---------------------------------------------------------------------------
# Fused Pallas kernel: TB batch elements per grid step.
# ---------------------------------------------------------------------------
def _bridge_kernel(L, H, W, TB, KH, mm_dtype, *refs):
    x_refs = refs[:L]                # (TB, Ci*Hi, Wi) each (mean fold: rows = channel blocks)
    a_refs = refs[L:2 * L]           # (H+2*PAD, Ci*Hi)  mean-folded, v-padded row interp
    mwt_refs = refs[2 * L:3 * L]     # (Wi, W)           transposed col interp
    band_ref = refs[3 * L]           # (KH, L*W, W)      banded conv weight
    o_ref = refs[3 * L + 1]          # (TB, L, H, W)
    rv_ref = refs[3 * L + 2]         # VMEM scratch (TB, H+2*PAD, L*W), f32

    PAD = (KH - 1) // 2
    f32 = jnp.float32
    approx = jnp.dtype(mm_dtype) == jnp.dtype(jnp.bfloat16)

    # Hoist constant loads out of the TB loop.
    a_mats = [a_refs[i][...] for i in range(L)]
    mwt_mats = [mwt_refs[i][...] for i in range(L)]
    band = band_ref[...]

    for t in range(TB):
        # Stage 1: channel mean + separable bilinear resize, folded into two MXU
        # matmuls per scale; result lands already vertically zero-padded, with the
        # L scales side-by-side along lanes.
        pieces = []
        for i in range(L):
            xi = x_refs[i][t].astype(mm_dtype)                        # (Ci*Hi, Wi)
            tm = jnp.dot(a_mats[i], xi, preferred_element_type=f32)   # (H+2PAD, Wi)
            pieces.append(jnp.dot(tm.astype(mm_dtype), mwt_mats[i],
                                  preferred_element_type=f32))        # (H+2PAD, W)
        rv_ref[t] = jnp.concatenate(pieces, axis=-1)                   # (H+2PAD, L*W)

        # Stage 2: 7x7 conv as KH banded matmuls of (H, L*W) @ (L*W, W).
        # Two partial f32 accumulators keep the serial add chain short (v5e/v6e MRF);
        # the matmuls stay back-to-back for the v7x MRB.
        acc0 = jnp.zeros((H, W), f32)
        acc1 = jnp.zeros((H, W), f32)
        for kh in range(KH):
            win = rv_ref[t, kh:kh + H, :].astype(mm_dtype)            # (H, L*W)
            part = jnp.dot(win, band[kh], preferred_element_type=f32)
            if kh % 2 == 0:
                acc0 = acc0 + part
            else:
                acc1 = acc1 + part
        acc = acc0 + acc1

        # Stage 3: sigmoid (exp + reciprocal on the EUP slot) + attention multiply.
        att = pl.reciprocal(1.0 + jnp.exp(-acc), approx=approx)
        r = rv_ref[t, PAD:PAD + H, :]                                  # (H, L*W) f32
        for i in range(L):
            o_ref[t, i] = (r[:, i * W:(i + 1) * W] * att).astype(o_ref.dtype)


# ---------------------------------------------------------------------------
# Wrapper.
# ---------------------------------------------------------------------------
def spatial_attention_bridge_forward(inputs, conv_w, *, matmul_dtype=jnp.float32,
                                     batch_block=None):
    """inputs: list of (N, Ci, Hi, Wi) NCHW arrays; conv_w: (1, L, 7, 7), L = len(inputs).

    Returns (N, L, H, W) with H/W from inputs[0] (matching the PyTorch module).
    matmul_dtype=jnp.bfloat16 enables the bf16 MXU-operand path (v6e/v7x)."""
    L = len(inputs)
    N, _, H, W = inputs[0].shape
    KH = conv_w.shape[2]
    PAD = (KH - 1) // 2
    HP = H + 2 * PAD

    TB = batch_block if batch_block is not None else _pick_tb(N)
    assert N % TB == 0, "batch_block must divide the batch size"

    x2d, a_mats, mwt_mats = [], [], []
    for x in inputs:
        _, ci, hi, wi = x.shape
        a_np, mwt_np = _mean_resize_matrices(ci, hi, wi, H, W, PAD)
        a_mats.append(jnp.asarray(a_np, dtype=matmul_dtype))
        mwt_mats.append(jnp.asarray(mwt_np, dtype=matmul_dtype))
        # Free metadata reshape (contiguous collapse) -> kernel needs no reshapes.
        x2d.append(x.reshape(N, ci * hi, wi))
    band = _banded_conv_weight(conv_w, W, matmul_dtype)               # (KH, L*W, W)

    operands = x2d + a_mats + mwt_mats + [band]
    in_specs = []
    for x in x2d:
        in_specs.append(pl.BlockSpec((TB, x.shape[1], x.shape[2]),
                                     lambda b: (b, 0, 0)))
    for m in a_mats + mwt_mats:
        in_specs.append(pl.BlockSpec(m.shape, lambda b: (0, 0)))
    in_specs.append(pl.BlockSpec(band.shape, lambda b: (0, 0, 0)))

    return pl.pallas_call(
        functools.partial(_bridge_kernel, L, H, W, TB, KH, matmul_dtype),
        out_shape=jax.ShapeDtypeStruct((N, L, H, W), inputs[0].dtype),
        grid_spec=pltpu.PrefetchScalarGridSpec(
            num_scalar_prefetch=0,
            grid=(N // TB,),                                # parallel over batch blocks
            in_specs=in_specs,
            out_specs=pl.BlockSpec((TB, L, H, W), lambda b: (b, 0, 0, 0)),
            scratch_shapes=[pltpu.VMEM((TB, HP, L * W), jnp.float32)],
        ),
        compiler_params=pltpu.CompilerParams(
            dimension_semantics=("parallel",),
        ),
    )(*operands)


# ---------------------------------------------------------------------------
# Pure NumPy (float64) reference implementing the PyTorch forward directly.
# ---------------------------------------------------------------------------
def _reference_forward_np(inputs_np, conv_w_np):
    L = len(inputs_np)
    N, _, H, W = inputs_np[0].shape
    chans = []
    for x in inputs_np:
        x = x.astype(np.float64)
        hi, wi = x.shape[2], x.shape[3]
        mh = _interp_matrix(hi, H).astype(np.float64)
        mw = _interp_matrix(wi, W).astype(np.float64)
        r = np.einsum("nchw,th,uw->nctu", x, mh, mw)       # bilinear resize per channel
        chans.append(r.mean(axis=1, keepdims=True))        # channel mean
    xcat = np.concatenate(chans, axis=1)                   # (N, L, H, W)
    wt = conv_w_np.astype(np.float64)[0]                   # (L, KH, KW)
    KH, KW = wt.shape[1], wt.shape[2]
    ph, pw = (KH - 1) // 2, (KW - 1) // 2
    xpad = np.pad(xcat, ((0, 0), (0, 0), (ph, ph), (pw, pw)))
    att = np.zeros((N, H, W), dtype=np.float64)
    for i in range(L):
        for kh in range(KH):
            for kw in range(KW):
                att += wt[i, kh, kw] * xpad[:, i, kh:kh + H, kw:kw + W]
    att = 1.0 / (1.0 + np.exp(-att))
    return xcat * att[:, None, :, :]


if __name__ == "__main__":
    key = jax.random.PRNGKey(0)
    k1, k2, k3, kw = jax.random.split(key, 4)

    # SpatialAttentionBridge(in_channels_list) with 3 multi-scale inputs.
    in_channels_list = [4, 4, 8]
    L = len(in_channels_list)
    N = 2
    inputs = [
        jax.random.normal(k1, (N, in_channels_list[0], 16, 16), jnp.float32),  # target 16x16
        jax.random.normal(k2, (N, in_channels_list[1], 8, 8), jnp.float32),
        jax.random.normal(k3, (N, in_channels_list[2], 32, 32), jnp.float32),
    ]
    # nn.Conv2d(L, 1, kernel_size=7, padding=3, bias=False) weight.
    fan_in = L * 7 * 7
    bound = 1.0 / np.sqrt(fan_in)
    conv_w = jax.random.uniform(kw, (1, L, 7, 7), jnp.float32, minval=-bound, maxval=bound)

    ref = _reference_forward_np([np.asarray(x) for x in inputs], np.asarray(conv_w))

    # f32-operand build: tight check against the float64 reference.
    fwd_f32 = jax.jit(functools.partial(spatial_attention_bridge_forward,
                                        matmul_dtype=jnp.float32))
    out_f32 = jax.block_until_ready(fwd_f32(inputs, conv_w))
    assert out_f32.shape == (N, L, 16, 16)
    np.testing.assert_allclose(np.asarray(out_f32), ref, rtol=2e-3, atol=2e-3)

    # bf16-operand build (v6e/v7x MXU throughput path): looser tolerance.
    fwd_bf16 = jax.jit(functools.partial(spatial_attention_bridge_forward,
                                         matmul_dtype=jnp.bfloat16))
    out_bf16 = jax.block_until_ready(fwd_bf16(inputs, conv_w))
    np.testing.assert_allclose(np.asarray(out_bf16), ref, rtol=4e-2, atol=4e-2)

    print("KERNEL_OK")
</pallas_src>

<mosaic_0001>
module attributes {stable_mosaic.version = 11 : i64} {
  func.func @_bridge_kernel(%arg0: i32, %arg1: memref<1x64x16xf32, #tpu.memory_space<vmem>>, %arg2: memref<1x32x8xf32, #tpu.memory_space<vmem>>, %arg3: memref<1x256x32xf32, #tpu.memory_space<vmem>>, %arg4: memref<22x64xf32, #tpu.memory_space<vmem>>, %arg5: memref<22x32xf32, #tpu.memory_space<vmem>>, %arg6: memref<22x256xf32, #tpu.memory_space<vmem>>, %arg7: memref<16x16xf32, #tpu.memory_space<vmem>>, %arg8: memref<8x16xf32, #tpu.memory_space<vmem>>, %arg9: memref<32x16xf32, #tpu.memory_space<vmem>>, %arg10: memref<7x48x16xf32, #tpu.memory_space<vmem>>, %arg11: memref<1x3x16x16xf32, #tpu.memory_space<vmem>>, %arg12: memref<1x22x48xf32, #tpu.memory_space<vmem>>) attributes {dimension_semantics = [#tpu.dimension_semantics<parallel>], iteration_bounds = array<i64: 2>, scalar_prefetch = 0 : i64, scratch_operands = 1 : i64, tpu.core_type = #tpu.core_type<tc>, window_params = [{transform_indices = @transform_0, window_bounds = array<i64: 1, 64, 16>}, {transform_indices = @transform_1, window_bounds = array<i64: 1, 32, 8>}, {transform_indices = @transform_2, window_bounds = array<i64: 1, 256, 32>}, {pipeline_mode = #tpu.pipeline_mode<synchronous>, transform_indices = @transform_3, window_bounds = array<i64: 22, 64>}, {pipeline_mode = #tpu.pipeline_mode<synchronous>, transform_indices = @transform_4, window_bounds = array<i64: 22, 32>}, {pipeline_mode = #tpu.pipeline_mode<synchronous>, transform_indices = @transform_5, window_bounds = array<i64: 22, 256>}, {pipeline_mode = #tpu.pipeline_mode<synchronous>, transform_indices = @transform_6, window_bounds = array<i64: 16, 16>}, {pipeline_mode = #tpu.pipeline_mode<synchronous>, transform_indices = @transform_7, window_bounds = array<i64: 8, 16>}, {pipeline_mode = #tpu.pipeline_mode<synchronous>, transform_indices = @transform_8, window_bounds = array<i64: 32, 16>}, {pipeline_mode = #tpu.pipeline_mode<synchronous>, transform_indices = @transform_9, window_bounds = array<i64: 7, 48, 16>}, {transform_indices = @transform_10, window_bounds = array<i64: 1, 3, 16, 16>}]} {
    %c0 = arith.constant 0 : index
    %c0_0 = arith.constant 0 : index
    %0 = vector.load %arg4[%c0, %c0_0] : memref<22x64xf32, #tpu.memory_space<vmem>>, vector<22x64xf32>
    %c0_1 = arith.constant 0 : index
    %c0_2 = arith.constant 0 : index
    %1 = vector.load %arg5[%c0_1, %c0_2] : memref<22x32xf32, #tpu.memory_space<vmem>>, vector<22x32xf32>
    %c0_3 = arith.constant 0 : index
    %c0_4 = arith.constant 0 : index
    %2 = vector.load %arg6[%c0_3, %c0_4] : memref<22x256xf32, #tpu.memory_space<vmem>>, vector<22x256xf32>
    %c0_5 = arith.constant 0 : index
    %c0_6 = arith.constant 0 : index
    %3 = vector.load %arg7[%c0_5, %c0_6] : memref<16x16xf32, #tpu.memory_space<vmem>>, vector<16x16xf32>
    %c0_7 = arith.constant 0 : index
    %c0_8 = arith.constant 0 : index
    %4 = vector.load %arg8[%c0_7, %c0_8] : memref<8x16xf32, #tpu.memory_space<vmem>>, vector<8x16xf32>
    %c0_9 = arith.constant 0 : index
    %c0_10 = arith.constant 0 : index
    %5 = vector.load %arg9[%c0_9, %c0_10] : memref<32x16xf32, #tpu.memory_space<vmem>>, vector<32x16xf32>
    %c0_11 = arith.constant 0 : index
    %c0_12 = arith.constant 0 : index
    %c0_13 = arith.constant 0 : index
    %6 = vector.load %arg10[%c0_11, %c0_12, %c0_13] : memref<7x48x16xf32, #tpu.memory_space<vmem>>, vector<7x48x16xf32>
    %c0_14 = arith.constant 0 : index
    %c0_15 = arith.constant 0 : index
    %c0_16 = arith.constant 0 : index
    %7 = vector.load %arg1[%c0_14, %c0_15, %c0_16] : memref<1x64x16xf32, #tpu.memory_space<vmem>>, vector<1x64x16xf32>
    %8 = vector.shape_cast %7 : vector<1x64x16xf32> to vector<64x16xf32>
    %cst = arith.constant dense<0.000000e+00> : vector<22x16xf32>
    %9 = tpu.matmul %0, %8, %cst {dimension_numbers = #tpu.dot_dimension_numbers<[1], [0], [0], [1], [0, 0, 1, 1], [], []>} : vector<22x64xf32>, vector<64x16xf32>, vector<22x16xf32> -> vector<22x16xf32>
    %cst_17 = arith.constant dense<0.000000e+00> : vector<22x16xf32>
    %10 = tpu.matmul %9, %3, %cst_17 {dimension_numbers = #tpu.dot_dimension_numbers<[1], [0], [0], [1], [0, 0, 1, 1], [], []>} : vector<22x16xf32>, vector<16x16xf32>, vector<22x16xf32> -> vector<22x16xf32>
    %c0_18 = arith.constant 0 : index
    %c0_19 = arith.constant 0 : index
    %c0_20 = arith.constant 0 : index
    %11 = vector.load %arg2[%c0_18, %c0_19, %c0_20] : memref<1x32x8xf32, #tpu.memory_space<vmem>>, vector<1x32x8xf32>
    %12 = vector.shape_cast %11 : vector<1x32x8xf32> to vector<32x8xf32>
    %cst_21 = arith.constant dense<0.000000e+00> : vector<22x8xf32>
    %13 = tpu.matmul %1, %12, %cst_21 {dimension_numbers = #tpu.dot_dimension_numbers<[1], [0], [0], [1], [0, 0, 1, 1], [], []>} : vector<22x32xf32>, vector<32x8xf32>, vector<22x8xf32> -> vector<22x8xf32>
    %cst_22 = arith.constant dense<0.000000e+00> : vector<22x16xf32>
    %14 = tpu.matmul %13, %4, %cst_22 {dimension_numbers = #tpu.dot_dimension_numbers<[1], [0], [0], [1], [0, 0, 1, 1], [], []>} : vector<22x8xf32>, vector<8x16xf32>, vector<22x16xf32> -> vector<22x16xf32>
    %c0_23 = arith.constant 0 : index
    %c0_24 = arith.constant 0 : index
    %c0_25 = arith.constant 0 : index
    %15 = vector.load %arg3[%c0_23, %c0_24, %c0_25] : memref<1x256x32xf32, #tpu.memory_space<vmem>>, vector<1x256x32xf32>
    %16 = vector.shape_cast %15 : vector<1x256x32xf32> to vector<256x32xf32>
    %cst_26 = arith.constant dense<0.000000e+00> : vector<22x32xf32>
    %17 = tpu.matmul %2, %16, %cst_26 {dimension_numbers = #tpu.dot_dimension_numbers<[1], [0], [0], [1], [0, 0, 1, 1], [], []>} : vector<22x256xf32>, vector<256x32xf32>, vector<22x32xf32> -> vector<22x32xf32>
    %cst_27 = arith.constant dense<0.000000e+00> : vector<22x16xf32>
    %18 = tpu.matmul %17, %5, %cst_27 {dimension_numbers = #tpu.dot_dimension_numbers<[1], [0], [0], [1], [0, 0, 1, 1], [], []>} : vector<22x32xf32>, vector<32x16xf32>, vector<22x16xf32> -> vector<22x16xf32>
    %19 = tpu.concatenate %10, %14, %18 in 1 : vector<22x16xf32>, vector<22x16xf32>, vector<22x16xf32> -> vector<22x48xf32>
    %c0_28 = arith.constant 0 : index
    %c0_29 = arith.constant 0 : index
    %c0_30 = arith.constant 0 : index
    %20 = vector.load %arg12[%c0_28, %c0_29, %c0_30] : memref<1x22x48xf32, #tpu.memory_space<vmem>>, vector<1x22x48xf32>
    %21 = vector.shape_cast %20 : vector<1x22x48xf32> to vector<22x48xf32>
    %22 = vector.shape_cast %19 : vector<22x48xf32> to vector<1x22x48xf32>
    tpu.vector_store %arg12[%c0_28, %c0_29, %c0_30], %22 {strides = array<i32>} : memref<1x22x48xf32, #tpu.memory_space<vmem>>, vector<1x22x48xf32>,
    %cst_31 = arith.constant 0.000000e+00 : f32
    %23 = vector.broadcast %cst_31 : f32 to vector<16x16xf32>
    %cst_32 = arith.constant 0.000000e+00 : f32
    %24 = vector.broadcast %cst_32 : f32 to vector<16x16xf32>
    %c0_33 = arith.constant 0 : index
    %c0_34 = arith.constant 0 : index
    %c0_35 = arith.constant 0 : index
    %25 = vector.load %arg12[%c0_33, %c0_34, %c0_35] : memref<1x22x48xf32, #tpu.memory_space<vmem>>, vector<1x16x48xf32>
    %26 = vector.shape_cast %25 : vector<1x16x48xf32> to vector<16x48xf32>
    %27 = vector.extract_strided_slice %6 {offsets = [0, 0, 0], sizes = [1, 48, 16], strides = [1, 1, 1]} : vector<7x48x16xf32> to vector<1x48x16xf32>
    %28 = vector.shape_cast %27 : vector<1x48x16xf32> to vector<48x16xf32>
    %cst_36 = arith.constant dense<0.000000e+00> : vector<16x16xf32>
    %29 = tpu.matmul %26, %28, %cst_36 {dimension_numbers = #tpu.dot_dimension_numbers<[1], [0], [0], [1], [0, 0, 1, 1], [], []>} : vector<16x48xf32>, vector<48x16xf32>, vector<16x16xf32> -> vector<16x16xf32>
    %30 = arith.addf %23, %29 : vector<16x16xf32>
    %c0_37 = arith.constant 0 : index
    %c1 = arith.constant 1 : index
    %c0_38 = arith.constant 0 : index
    %31 = vector.load %arg12[%c0_37, %c1, %c0_38] : memref<1x22x48xf32, #tpu.memory_space<vmem>>, vector<1x16x48xf32>
    %32 = vector.shape_cast %31 : vector<1x16x48xf32> to vector<16x48xf32>
    %33 = vector.extract_strided_slice %6 {offsets = [1, 0, 0], sizes = [1, 48, 16], strides = [1, 1, 1]} : vector<7x48x16xf32> to vector<1x48x16xf32>
    %34 = vector.shape_cast %33 : vector<1x48x16xf32> to vector<48x16xf32>
    %cst_39 = arith.constant dense<0.000000e+00> : vector<16x16xf32>
    %35 = tpu.matmul %32, %34, %cst_39 {dimension_numbers = #tpu.dot_dimension_numbers<[1], [0], [0], [1], [0, 0, 1, 1], [], []>} : vector<16x48xf32>, vector<48x16xf32>, vector<16x16xf32> -> vector<16x16xf32>
    %36 = arith.addf %24, %35 : vector<16x16xf32>
    %c0_40 = arith.constant 0 : index
    %c2 = arith.constant 2 : index
    %c0_41 = arith.constant 0 : index
    %37 = vector.load %arg12[%c0_40, %c2, %c0_41] : memref<1x22x48xf32, #tpu.memory_space<vmem>>, vector<1x16x48xf32>
    %38 = vector.shape_cast %37 : vector<1x16x48xf32> to vector<16x48xf32>
    %39 = vector.extract_strided_slice %6 {offsets = [2, 0, 0], sizes = [1, 48, 16], strides = [1, 1, 1]} : vector<7x48x16xf32> to vector<1x48x16xf32>
    %40 = vector.shape_cast %39 : vector<1x48x16xf32> to vector<48x16xf32>
    %cst_42 = arith.constant dense<0.000000e+00> : vector<16x16xf32>
    %41 = tpu.matmul %38, %40, %cst_42 {dimension_numbers = #tpu.dot_dimension_numbers<[1], [0], [0], [1], [0, 0, 1, 1], [], []>} : vector<16x48xf32>, vector<48x16xf32>, vector<16x16xf32> -> vector<16x16xf32>
    %42 = arith.addf %30, %41 : vector<16x16xf32>
    %c0_43 = arith.constant 0 : index
    %c3 = arith.constant 3 : index
    %c0_44 = arith.constant 0 : index
    %43 = vector.load %arg12[%c0_43, %c3, %c0_44] : memref<1x22x48xf32, #tpu.memory_space<vmem>>, vector<1x16x48xf32>
    %44 = vector.shape_cast %43 : vector<1x16x48xf32> to vector<16x48xf32>
    %45 = vector.extract_strided_slice %6 {offsets = [3, 0, 0], sizes = [1, 48, 16], strides = [1, 1, 1]} : vector<7x48x16xf32> to vector<1x48x16xf32>
    %46 = vector.shape_cast %45 : vector<1x48x16xf32> to vector<48x16xf32>
    %cst_45 = arith.constant dense<0.000000e+00> : vector<16x16xf32>
    %47 = tpu.matmul %44, %46, %cst_45 {dimension_numbers = #tpu.dot_dimension_numbers<[1], [0], [0], [1], [0, 0, 1, 1], [], []>} : vector<16x48xf32>, vector<48x16xf32>, vector<16x16xf32> -> vector<16x16xf32>
    %48 = arith.addf %36, %47 : vector<16x16xf32>
    %c0_46 = arith.constant 0 : index
    %c4 = arith.constant 4 : index
    %c0_47 = arith.constant 0 : index
    %49 = vector.load %arg12[%c0_46, %c4, %c0_47] : memref<1x22x48xf32, #tpu.memory_space<vmem>>, vector<1x16x48xf32>
    %50 = vector.shape_cast %49 : vector<1x16x48xf32> to vector<16x48xf32>
    %51 = vector.extract_strided_slice %6 {offsets = [4, 0, 0], sizes = [1, 48, 16], strides = [1, 1, 1]} : vector<7x48x16xf32> to vector<1x48x16xf32>
    %52 = vector.shape_cast %51 : vector<1x48x16xf32> to vector<48x16xf32>
    %cst_48 = arith.constant dense<0.000000e+00> : vector<16x16xf32>
    %53 = tpu.matmul %50, %52, %cst_48 {dimension_numbers = #tpu.dot_dimension_numbers<[1], [0], [0], [1], [0, 0, 1, 1], [], []>} : vector<16x48xf32>, vector<48x16xf32>, vector<16x16xf32> -> vector<16x16xf32>
    %54 = arith.addf %42, %53 : vector<16x16xf32>
    %c0_49 = arith.constant 0 : index
    %c5 = arith.constant 5 : index
    %c0_50 = arith.constant 0 : index
    %55 = vector.load %arg12[%c0_49, %c5, %c0_50] : memref<1x22x48xf32, #tpu.memory_space<vmem>>, vector<1x16x48xf32>
    %56 = vector.shape_cast %55 : vector<1x16x48xf32> to vector<16x48xf32>
    %57 = vector.extract_strided_slice %6 {offsets = [5, 0, 0], sizes = [1, 48, 16], strides = [1, 1, 1]} : vector<7x48x16xf32> to vector<1x48x16xf32>
    %58 = vector.shape_cast %57 : vector<1x48x16xf32> to vector<48x16xf32>
    %cst_51 = arith.constant dense<0.000000e+00> : vector<16x16xf32>
    %59 = tpu.matmul %56, %58, %cst_51 {dimension_numbers = #tpu.dot_dimension_numbers<[1], [0], [0], [1], [0, 0, 1, 1], [], []>} : vector<16x48xf32>, vector<48x16xf32>, vector<16x16xf32> -> vector<16x16xf32>
    %60 = arith.addf %48, %59 : vector<16x16xf32>
    %c0_52 = arith.constant 0 : index
    %c6 = arith.constant 6 : index
    %c0_53 = arith.constant 0 : index
    %61 = vector.load %arg12[%c0_52, %c6, %c0_53] : memref<1x22x48xf32, #tpu.memory_space<vmem>>, vector<1x16x48xf32>
    %62 = vector.shape_cast %61 : vector<1x16x48xf32> to vector<16x48xf32>
    %63 = vector.extract_strided_slice %6 {offsets = [6, 0, 0], sizes = [1, 48, 16], strides = [1, 1, 1]} : vector<7x48x16xf32> to vector<1x48x16xf32>
    %64 = vector.shape_cast %63 : vector<1x48x16xf32> to vector<48x16xf32>
    %cst_54 = arith.constant dense<0.000000e+00> : vector<16x16xf32>
    %65 = tpu.matmul %62, %64, %cst_54 {dimension_numbers = #tpu.dot_dimension_numbers<[1], [0], [0], [1], [0, 0, 1, 1], [], []>} : vector<16x48xf32>, vector<48x16xf32>, vector<16x16xf32> -> vector<16x16xf32>
    %66 = arith.addf %54, %65 : vector<16x16xf32>
    %67 = arith.addf %66, %60 : vector<16x16xf32>
    %cst_55 = arith.constant 0.000000e+00 : f32
    %68 = vector.broadcast %cst_55 : f32 to vector<16x16xf32>
    %69 = arith.subf %68, %67 : vector<16x16xf32>
    %70 = math.exp %69 : vector<16x16xf32>
    %cst_56 = arith.constant 1.000000e+00 : f32
    %71 = vector.broadcast %cst_56 : f32 to vector<16x16xf32>
    %72 = arith.addf %71, %70 : vector<16x16xf32>
    %73 = tpu.reciprocal %72 : vector<16x16xf32> -> vector<16x16xf32>
    %c0_57 = arith.constant 0 : index
    %c3_58 = arith.constant 3 : index
    %c0_59 = arith.constant 0 : index
    %74 = vector.load %arg12[%c0_57, %c3_58, %c0_59] : memref<1x22x48xf32, #tpu.memory_space<vmem>>, vector<1x16x48xf32>
    %75 = vector.shape_cast %74 : vector<1x16x48xf32> to vector<16x48xf32>
    %76 = vector.extract_strided_slice %75 {offsets = [0, 0], sizes = [16, 16], strides = [1, 1]} : vector<16x48xf32> to vector<16x16xf32>
    %77 = arith.mulf %76, %73 : vector<16x16xf32>
    %c0_60 = arith.constant 0 : index
    %c0_61 = arith.constant 0 : index
    %c0_62 = arith.constant 0 : index
    %c0_63 = arith.constant 0 : index
    %78 = vector.load %arg11[%c0_60, %c0_61, %c0_62, %c0_63] : memref<1x3x16x16xf32, #tpu.memory_space<vmem>>, vector<1x1x16x16xf32>
    %79 = vector.shape_cast %78 : vector<1x1x16x16xf32> to vector<16x16xf32>
    %80 = vector.shape_cast %77 : vector<16x16xf32> to vector<1x1x16x16xf32>
    tpu.vector_store %arg11[%c0_60, %c0_61, %c0_62, %c0_63], %80 {strides = array<i32>} : memref<1x3x16x16xf32, #tpu.memory_space<vmem>>, vector<1x1x16x16xf32>,
    %81 = vector.extract_strided_slice %75 {offsets = [0, 16], sizes = [16, 16], strides = [1, 1]} : vector<16x48xf32> to vector<16x16xf32>
    %82 = arith.mulf %81, %73 : vector<16x16xf32>
    %c0_64 = arith.constant 0 : index
    %c1_65 = arith.constant 1 : index
    %c0_66 = arith.constant 0 : index
    %c0_67 = arith.constant 0 : index
    %83 = vector.load %arg11[%c0_64, %c1_65, %c0_66, %c0_67] : memref<1x3x16x16xf32, #tpu.memory_space<vmem>>, vector<1x1x16x16xf32>
    %84 = vector.shape_cast %83 : vector<1x1x16x16xf32> to vector<16x16xf32>
    %85 = vector.shape_cast %82 : vector<16x16xf32> to vector<1x1x16x16xf32>
    tpu.vector_store %arg11[%c0_64, %c1_65, %c0_66, %c0_67], %85 {strides = array<i32>} : memref<1x3x16x16xf32, #tpu.memory_space<vmem>>, vector<1x1x16x16xf32>,
    %86 = vector.extract_strided_slice %75 {offsets = [0, 32], sizes = [16, 16], strides = [1, 1]} : vector<16x48xf32> to vector<16x16xf32>
    %87 = arith.mulf %86, %73 : vector<16x16xf32>
    %c0_68 = arith.constant 0 : index
    %c2_69 = arith.constant 2 : index
    %c0_70 = arith.constant 0 : index
    %c0_71 = arith.constant 0 : index
    %88 = vector.load %arg11[%c0_68, %c2_69, %c0_70, %c0_71] : memref<1x3x16x16xf32, #tpu.memory_space<vmem>>, vector<1x1x16x16xf32>
    %89 = vector.shape_cast %88 : vector<1x1x16x16xf32> to vector<16x16xf32>
    %90 = vector.shape_cast %87 : vector<16x16xf32> to vector<1x1x16x16xf32>
    tpu.vector_store %arg11[%c0_68, %c2_69, %c0_70, %c0_71], %90 {strides = array<i32>} : memref<1x3x16x16xf32, #tpu.memory_space<vmem>>, vector<1x1x16x16xf32>,
    return
  }
  func.func @transform_0(%arg0: i32) -> (i32, i32, i32) {
    %c0_i32 = arith.constant 0 : i32
    %c0_i32_0 = arith.constant 0 : i32
    %c0_i32_1 = arith.constant 0 : i32
    return %arg0, %c0_i32, %c0_i32_0 : i32, i32, i32
  }
  func.func @transform_1(%arg0: i32) -> (i32, i32, i32) {
    %c0_i32 = arith.constant 0 : i32
    %c0_i32_0 = arith.constant 0 : i32
    %c0_i32_1 = arith.constant 0 : i32
    return %arg0, %c0_i32, %c0_i32_0 : i32, i32, i32
  }
  func.func @transform_2(%arg0: i32) -> (i32, i32, i32) {
    %c0_i32 = arith.constant 0 : i32
    %c0_i32_0 = arith.constant 0 : i32
    %c0_i32_1 = arith.constant 0 : i32
    return %arg0, %c0_i32, %c0_i32_0 : i32, i32, i32
  }
  func.func @transform_3(%arg0: i32) -> (i32, i32) {
    %c0_i32 = arith.constant 0 : i32
    %c0_i32_0 = arith.constant 0 : i32
    %c0_i32_1 = arith.constant 0 : i32
    return %c0_i32, %c0_i32_0 : i32, i32
  }
  func.func @transform_4(%arg0: i32) -> (i32, i32) {
    %c0_i32 = arith.constant 0 : i32
    %c0_i32_0 = arith.constant 0 : i32
    %c0_i32_1 = arith.constant 0 : i32
    return %c0_i32, %c0_i32_0 : i32, i32
  }
  func.func @transform_5(%arg0: i32) -> (i32, i32) {
    %c0_i32 = arith.constant 0 : i32
    %c0_i32_0 = arith.constant 0 : i32
    %c0_i32_1 = arith.constant 0 : i32
    return %c0_i32, %c0_i32_0 : i32, i32
  }
  func.func @transform_6(%arg0: i32) -> (i32, i32) {
    %c0_i32 = arith.constant 0 : i32
    %c0_i32_0 = arith.constant 0 : i32
    %c0_i32_1 = arith.constant 0 : i32
    return %c0_i32, %c0_i32_0 : i32, i32
  }
  func.func @transform_7(%arg0: i32) -> (i32, i32) {
    %c0_i32 = arith.constant 0 : i32
    %c0_i32_0 = arith.constant 0 : i32
    %c0_i32_1 = arith.constant 0 : i32
    return %c0_i32, %c0_i32_0 : i32, i32
  }
  func.func @transform_8(%arg0: i32) -> (i32, i32) {
    %c0_i32 = arith.constant 0 : i32
    %c0_i32_0 = arith.constant 0 : i32
    %c0_i32_1 = arith.constant 0 : i32
    return %c0_i32, %c0_i32_0 : i32, i32
  }
  func.func @transform_9(%arg0: i32) -> (i32, i32, i32) {
    %c0_i32 = arith.constant 0 : i32
    %c0_i32_0 = arith.constant 0 : i32
    %c0_i32_1 = arith.constant 0 : i32
    %c0_i32_2 = arith.constant 0 : i32
    return %c0_i32, %c0_i32_0, %c0_i32_1 : i32, i32, i32
  }
  func.func @transform_10(%arg0: i32) -> (i32, i32, i32, i32) {
    %c0_i32 = arith.constant 0 : i32
    %c0_i32_0 = arith.constant 0 : i32
    %c0_i32_1 = arith.constant 0 : i32
    %c0_i32_2 = arith.constant 0 : i32
    return %arg0, %c0_i32, %c0_i32_0, %c0_i32_1 : i32, i32, i32, i32
  }
}

</mosaic_0001>

<llo_original>
// kernel: spatial_attention_bridge_forward.1
$region0: #{spatial_attention_bridge_forward.1}
  #allocation0 [shape = 'u32[]', space=smem, size = 0x4, offset = 0x4, fixed_abs, tag = 'smem constant byte address 0x4 - core index']
  #allocation1 [shape = 'u32[144,128]{1,0:T(1,128)}', space=vmem, size = 0x12000, scoped, tag = 'internal scratch']
  #allocation2 [shape = 'f32[1,22,48]{2,1,0:T(8,128)}', space=vmem, size = 0x3000, scoped, tag = 'scratch operand']
  %s0 = inlined_call_operand.vmem [shape: f32[2,64,16], index: 0, kind: input, shape index: {}]
  %s1 = inlined_call_operand.vmem [shape: f32[2,32,8], index: 1, kind: input, shape index: {}]
  %s2 = inlined_call_operand.vmem [shape: f32[2,256,32], index: 2, kind: input, shape index: {}]
  %s3 = inlined_call_operand.vmem [shape: f32[22,64], index: 3, kind: input, shape index: {}]
  %s4 = inlined_call_operand.vmem [shape: f32[22,32], index: 4, kind: input, shape index: {}]
  %s5 = inlined_call_operand.vmem [shape: f32[22,256], index: 5, kind: input, shape index: {}]
  %s6 = inlined_call_operand.vmem [shape: f32[16,16], index: 6, kind: input, shape index: {}]
  %s7 = inlined_call_operand.vmem [shape: f32[8,16], index: 7, kind: input, shape index: {}]
  %s8 = inlined_call_operand.vmem [shape: f32[32,16], index: 8, kind: input, shape index: {}]
  %s9 = inlined_call_operand.vmem [shape: f32[7,48,16], index: 9, kind: input, shape index: {}]
  %s10 = inlined_call_operand.hbm [shape: f32[2,3,16,16], index: 10, kind: output, shape index: {}]
  %s11 = sld [smem:[#allocation0]]
  $region73: #{spatial_attention_bridge_forward.1} parent=0
    _
  %s13 = ssub.s32 1, %s11
  %s14 = scalar_select 0, %s13, %s11
  $region1: #{spatial_attention_bridge_forward.1} parent=0
    #allocation3 [shape = 'u8[49152]{0}', space=vmem, size = 0xc000, scoped, tag = 'output window, operand 0']
    #allocation4 [shape = 's32[2]{0}', space=sflag, size = 0x8, scoped, tag = 'scoped memory for spatial_attention_bridge_forward.1']
    %15 = vsyncpa [#allocation4], 0
    %s16 = scalar_lea.sflag [#allocation4], 1
    %17 = vsyncpa %s16, 0
    loop: start=0, step=1, limit=4
    $region2: #{spatial_attention_bridge_forward.1} parent=1 // loop_pre_header
      _
    $region3: #{spatial_attention_bridge_forward.1} parent=1 // loop_header
      %s19 = sphi 0, %s23
      %p20 = scmp.ge.s32.totalorder %s19, 4
      %s29 = sphi 0, %s31
      %s32 = sphi 0, %s29
      %s33 = sphi 0, %s32
      %s49 = sphi 0, %s33
      %s55 = sphi 0, %s57
      %s58 = sphi 0, %s55
      %s59 = sphi 0, %s58
      %s75 = sphi 0, %s59
      %s81 = sphi 0, %s83
      %s84 = sphi 0, %s81
      %s85 = sphi 0, %s84
      %s101 = sphi 0, %s85
      %s105 = sphi 0, %s105
      %s107 = sphi 0, %s105
      %s108 = sphi 0, %s107
      %s122 = sphi 0, %s108
      %s126 = sphi 0, %s126
      %s128 = sphi 0, %s126
      %s129 = sphi 0, %s128
      %s143 = sphi 0, %s129
      %s147 = sphi 0, %s147
      %s149 = sphi 0, %s147
      %s150 = sphi 0, %s149
      %s164 = sphi 0, %s150
      %s168 = sphi 0, %s168
      %s170 = sphi 0, %s168
      %s171 = sphi 0, %s170
      %s185 = sphi 0, %s171
      %s189 = sphi 0, %s189
      %s191 = sphi 0, %s189
      %s192 = sphi 0, %s191
      %s206 = sphi 0, %s192
      %s210 = sphi 0, %s210
      %s212 = sphi 0, %s210
      %s213 = sphi 0, %s212
      %s227 = sphi 0, %s213
      %s231 = sphi 0, %s231
      %s233 = sphi 0, %s231
      %s234 = sphi 0, %s233
      %s248 = sphi 0, %s234
      %s254 = sphi 0, %s256
      %s257 = sphi 0, %s254
      %s258 = sphi 0, %s257
      %s274 = sphi 0, %s258
    $region4: #{spatial_attention_bridge_forward.1} parent=1 // loop_header_branch
      %22 = sbr.rel (%p20) target = $region8
    $region5: #{spatial_attention_bridge_forward.1} parent=1 // loop_body
      %s24 = ssub.s32 %s19, 1
      %s25 = ssub.s32 %s19, 2
      %s26 = sadd.s32 %s19, 1
      %s27 = ssub.s32 %s19, %s26
      %p28 = scmp.eq.s32.totalorder %s27, 0
      %s30 = sadd.s32 %s29, 1
      %s31 = scalar_select %p28, %s29, %s30
      %p34 = pneg %p28
      %p35 = scmp.eq.s32.totalorder %s19, 1
      %p36 = por %p34, %p35
      %p37 = scmp.ne.s32.totalorder %s29, %s32
      %p38 = scmp.eq.s32.totalorder %s19, 0
      %p39 = por %p37, %p38
      %p40 = scmp.ne.s32.totalorder %s29, %s32
      %p41 = scmp.eq.s32.totalorder %s24, 1
      %p42 = por %p40, %p41
      %p43 = scmp.ne.s32.totalorder %s32, %s33
      %p44 = scmp.eq.s32.totalorder %s24, 0
      %p45 = por %p43, %p44
      %p46 = scmp.ne.s32.totalorder %s32, %s33
      %p47 = scmp.eq.s32.totalorder %s25, 1
      %p48 = por %p46, %p47
      %p50 = scmp.ne.s32.totalorder %s33, %s49
      %p51 = scmp.eq.s32.totalorder %s25, 0
      %p52 = por %p50, %p51
      %s53 = ssub.s32 %s19, %s26
      %p54 = scmp.eq.s32.totalorder %s53, 0
      %s56 = sadd.s32 %s55, 1
      %s57 = scalar_select %p54, %s55, %s56
      %p60 = pneg %p54
      %p61 = scmp.eq.s32.totalorder %s19, 1
      %p62 = por %p60, %p61
      %p63 = scmp.ne.s32.totalorder %s55, %s58
      %p64 = scmp.eq.s32.totalorder %s19, 0
      %p65 = por %p63, %p64
      %p66 = scmp.ne.s32.totalorder %s55, %s58
      %p67 = scmp.eq.s32.totalorder %s24, 1
      %p68 = por %p66, %p67
      %p69 = scmp.ne.s32.totalorder %s58, %s59
      %p70 = scmp.eq.s32.totalorder %s24, 0
      %p71 = por %p69, %p70
      %p72 = scmp.ne.s32.totalorder %s58, %s59
      %p73 = scmp.eq.s32.totalorder %s25, 1
      %p74 = por %p72, %p73
      %p76 = scmp.ne.s32.totalorder %s59, %s75
      %p77 = scmp.eq.s32.totalorder %s25, 0
      %p78 = por %p76, %p77
      %s79 = ssub.s32 %s19, %s26
      %p80 = scmp.eq.s32.totalorder %s79, 0
      %s82 = sadd.s32 %s81, 1
      %s83 = scalar_select %p80, %s81, %s82
      %p86 = pneg %p80
      %p87 = scmp.eq.s32.totalorder %s19, 1
      %p88 = por %p86, %p87
      %p89 = scmp.ne.s32.totalorder %s81, %s84
      %p90 = scmp.eq.s32.totalorder %s19, 0
      %p91 = por %p89, %p90
      %p92 = scmp.ne.s32.totalorder %s81, %s84
      %p93 = scmp.eq.s32.totalorder %s24, 1
      %p94 = por %p92, %p93
      %p95 = scmp.ne.s32.totalorder %s84, %s85
      %p96 = scmp.eq.s32.totalorder %s24, 0
      %p97 = por %p95, %p96
      %p98 = scmp.ne.s32.totalorder %s84, %s85
      %p99 = scmp.eq.s32.totalorder %s25, 1
      %p100 = por %p98, %p99
      %p102 = scmp.ne.s32.totalorder %s85, %s101
      %p103 = scmp.eq.s32.totalorder %s25, 0
      %p104 = por %p102, %p103
      %s106 = sadd.s32 %s105, 1
      %p109 = scmp.eq.s32.totalorder %s19, 1
      %p110 = scmp.ne.s32.totalorder %s105, %s107
      %p111 = scmp.eq.s32.totalorder %s19, 0
      %p112 = por %p110, %p111
      %p113 = scmp.ne.s32.totalorder %s105, %s107
      %p114 = scmp.eq.s32.totalorder %s24, 1
      %p115 = por %p113, %p114
      %p116 = scmp.ne.s32.totalorder %s107, %s108
      %p117 = scmp.eq.s32.totalorder %s24, 0
      %p118 = por %p116, %p117
      %p119 = scmp.ne.s32.totalorder %s107, %s108
      %p120 = scmp.eq.s32.totalorder %s25, 1
      %p121 = por %p119, %p120
      %p123 = scmp.ne.s32.totalorder %s108, %s122
      %p124 = scmp.eq.s32.totalorder %s25, 0
      %p125 = por %p123, %p124
      %s127 = sadd.s32 %s126, 1
      %p130 = scmp.eq.s32.totalorder %s19, 1
      %p131 = scmp.ne.s32.totalorder %s126, %s128
      %p132 = scmp.eq.s32.totalorder %s19, 0
      %p133 = por %p131, %p132
      %p134 = scmp.ne.s32.totalorder %s126, %s128
      %p135 = scmp.eq.s32.totalorder %s24, 1
      %p136 = por %p134, %p135
      %p137 = scmp.ne.s32.totalorder %s128, %s129
      %p138 = scmp.eq.s32.totalorder %s24, 0
      %p139 = por %p137, %p138
      %p140 = scmp.ne.s32.totalorder %s128, %s129
      %p141 = scmp.eq.s32.totalorder %s25, 1
      %p142 = por %p140, %p141
      %p144 = scmp.ne.s32.totalorder %s129, %s143
      %p145 = scmp.eq.s32.totalorder %s25, 0
      %p146 = por %p144, %p145
      %s148 = sadd.s32 %s147, 1
      %p151 = scmp.eq.s32.totalorder %s19, 1
      %p152 = scmp.ne.s32.totalorder %s147, %s149
      %p153 = scmp.eq.s32.totalorder %s19, 0
      %p154 = por %p152, %p153
      %p155 = scmp.ne.s32.totalorder %s147, %s149
      %p156 = scmp.eq.s32.totalorder %s24, 1
      %p157 = por %p155, %p156
      %p158 = scmp.ne.s32.totalorder %s149, %s150
      %p159 = scmp.eq.s32.totalorder %s24, 0
      %p160 = por %p158, %p159
      %p161 = scmp.ne.s32.totalorder %s149, %s150
      %p162 = scmp.eq.s32.totalorder %s25, 1
      %p163 = por %p161, %p162
      %p165 = scmp.ne.s32.totalorder %s150, %s164
      %p166 = scmp.eq.s32.totalorder %s25, 0
      %p167 = por %p165, %p166
      %s169 = sadd.s32 %s168, 1
      %p172 = scmp.eq.s32.totalorder %s19, 1
      %p173 = scmp.ne.s32.totalorder %s168, %s170
      %p174 = scmp.eq.s32.totalorder %s19, 0
      %p175 = por %p173, %p174
      %p176 = scmp.ne.s32.totalorder %s168, %s170
      %p177 = scmp.eq.s32.totalorder %s24, 1
      %p178 = por %p176, %p177
      %p179 = scmp.ne.s32.totalorder %s170, %s171
      %p180 = scmp.eq.s32.totalorder %s24, 0
      %p181 = por %p179, %p180
      %p182 = scmp.ne.s32.totalorder %s170, %s171
      %p183 = scmp.eq.s32.totalorder %s25, 1
      %p184 = por %p182, %p183
      %p186 = scmp.ne.s32.totalorder %s171, %s185
      %p187 = scmp.eq.s32.totalorder %s25, 0
      %p188 = por %p186, %p187
      %s190 = sadd.s32 %s189, 1
      %p193 = scmp.eq.s32.totalorder %s19, 1
      %p194 = scmp.ne.s32.totalorder %s189, %s191
      %p195 = scmp.eq.s32.totalorder %s19, 0
      %p196 = por %p194, %p195
      %p197 = scmp.ne.s32.totalorder %s189, %s191
      %p198 = scmp.eq.s32.totalorder %s24, 1
      %p199 = por %p197, %p198
      %p200 = scmp.ne.s32.totalorder %s191, %s192
      %p201 = scmp.eq.s32.totalorder %s24, 0
      %p202 = por %p200, %p201
      %p203 = scmp.ne.s32.totalorder %s191, %s192
      %p204 = scmp.eq.s32.totalorder %s25, 1
      %p205 = por %p203, %p204
      %p207 = scmp.ne.s32.totalorder %s192, %s206
      %p208 = scmp.eq.s32.totalorder %s25, 0
      %p209 = por %p207, %p208
      %s211 = sadd.s32 %s210, 1
      %p214 = scmp.eq.s32.totalorder %s19, 1
      %p215 = scmp.ne.s32.totalorder %s210, %s212
      %p216 = scmp.eq.s32.totalorder %s19, 0
      %p217 = por %p215, %p216
      %p218 = scmp.ne.s32.totalorder %s210, %s212
      %p219 = scmp.eq.s32.totalorder %s24, 1
      %p220 = por %p218, %p219
      %p221 = scmp.ne.s32.totalorder %s212, %s213
      %p222 = scmp.eq.s32.totalorder %s24, 0
      %p223 = por %p221, %p222
      %p224 = scmp.ne.s32.totalorder %s212, %s213
      %p225 = scmp.eq.s32.totalorder %s25, 1
      %p226 = por %p224, %p225
      %p228 = scmp.ne.s32.totalorder %s213, %s227
      %p229 = scmp.eq.s32.totalorder %s25, 0
      %p230 = por %p228, %p229
      %s232 = sadd.s32 %s231, 1
      %p235 = scmp.eq.s32.totalorder %s19, 1
      %p236 = scmp.ne.s32.totalorder %s231, %s233
      %p237 = scmp.eq.s32.totalorder %s19, 0
      %p238 = por %p236, %p237
      %p239 = scmp.ne.s32.totalorder %s231, %s233
      %p240 = scmp.eq.s32.totalorder %s24, 1
      %p241 = por %p239, %p240
      %p242 = scmp.ne.s32.totalorder %s233, %s234
      %p243 = scmp.eq.s32.totalorder %s24, 0
      %p244 = por %p242, %p243
      %p245 = scmp.ne.s32.totalorder %s233, %s234
      %p246 = scmp.eq.s32.totalorder %s25, 1
      %p247 = por %p245, %p246
      %p249 = scmp.ne.s32.totalorder %s234, %s248
      %p250 = scmp.eq.s32.totalorder %s25, 0
      %p251 = por %p249, %p250
      %s252 = ssub.s32 %s19, %s26
      %p253 = scmp.eq.s32.totalorder %s252, 0
      %s255 = sadd.s32 %s254, 1
      %s256 = scalar_select %p253, %s254, %s255
      %p259 = pneg %p253
      %p260 = scmp.eq.s32.totalorder %s19, 1
      %p261 = por %p259, %p260
      %p262 = scmp.ne.s32.totalorder %s254, %s257
      %p263 = scmp.eq.s32.totalorder %s19, 0
      %p264 = por %p262, %p263
      %p265 = scmp.ne.s32.totalorder %s254, %s257
      %p266 = scmp.eq.s32.totalorder %s24, 1
      %p267 = por %p265, %p266
      %p268 = scmp.ne.s32.totalorder %s257, %s258
      %p269 = scmp.eq.s32.totalorder %s24, 0
      %p270 = por %p268, %p269
      %p271 = scmp.ne.s32.totalorder %s257, %s258
      %p272 = scmp.eq.s32.totalorder %s25, 1
      %p273 = por %p271, %p272
      %p275 = scmp.ne.s32.totalorder %s258, %s274
      %p276 = scmp.eq.s32.totalorder %s25, 0
      %p277 = por %p275, %p276
      %p278 = scmp.le.s32.totalorder 1, %s19
      %p279 = scmp.lt.s32.totalorder %s19, 3
      %p280 = pnand %p278, %p279
      %p281 = pneg %p280
      // Predicated region
      $region9: #{spatial_attention_bridge_forward.1} parent=5 // pred_check
        _
      $region10: #{spatial_attention_bridge_forward.1} parent=5 // pred_check_branch
        %283 = sbr.rel (%p280) target = $region12
      $region11: #{spatial_attention_bridge_forward.1} parent=5 // pred_region
        %s284 = ssub.s32 %s19, 1
        // Predicated region
        $region13: #{spatial_attention_bridge_forward.1} parent=11 // pred_check
          %p285 = pneg %p118
        $region14: #{spatial_attention_bridge_forward.1} parent=11 // pred_check_branch
          %287 = sbr.rel (%p285) target = $region16
        $region15: #{spatial_attention_bridge_forward.1} parent=11 // pred_region
          _
        $region16: #{spatial_attention_bridge_forward.1} parent=11 // pred_fallthru
          _
        // Predicated region
        $region17: #{spatial_attention_bridge_forward.1} parent=11 // pred_check
          %p288 = pneg %p139
        $region18: #{spatial_attention_bridge_forward.1} parent=11 // pred_check_branch
          %290 = sbr.rel (%p288) target = $region20
        $region19: #{spatial_attention_bridge_forward.1} parent=11 // pred_region
          _
        $region20: #{spatial_attention_bridge_forward.1} parent=11 // pred_fallthru
          _
        // Predicated region
        $region21: #{spatial_attention_bridge_forward.1} parent=11 // pred_check
          %p291 = pneg %p160
        $region22: #{spatial_attention_bridge_forward.1} parent=11 // pred_check_branch
          %293 = sbr.rel (%p291) target = $region24
        $region23: #{spatial_attention_bridge_forward.1} parent=11 // pred_region
          _
        $region24: #{spatial_attention_bridge_forward.1} parent=11 // pred_fallthru
          _
        // Predicated region
        $region25: #{spatial_attention_bridge_forward.1} parent=11 // pred_check
          %p294 = pneg %p181
        $region26: #{spatial_attention_bridge_forward.1} parent=11 // pred_check_branch
          %296 = sbr.rel (%p294) target = $region28
        $region27: #{spatial_attention_bridge_forward.1} parent=11 // pred_region
          _
        $region28: #{spatial_attention_bridge_forward.1} parent=11 // pred_fallthru
          _
        // Predicated region
        $region29: #{spatial_attention_bridge_forward.1} parent=11 // pred_check
          %p297 = pneg %p202
        $region30: #{spatial_attention_bridge_forward.1} parent=11 // pred_check_branch
          %299 = sbr.rel (%p297) target = $region32
        $region31: #{spatial_attention_bridge_forward.1} parent=11 // pred_region
          _
        $region32: #{spatial_attention_bridge_forward.1} parent=11 // pred_fallthru
          _
        // Predicated region
        $region33: #{spatial_attention_bridge_forward.1} parent=11 // pred_check
          %p300 = pneg %p223
        $region34: #{spatial_attention_bridge_forward.1} parent=11 // pred_check_branch
          %302 = sbr.rel (%p300) target = $region36
        $region35: #{spatial_attention_bridge_forward.1} parent=11 // pred_region
          _
        $region36: #{spatial_attention_bridge_forward.1} parent=11 // pred_fallthru
          _
        // Predicated region
        $region37: #{spatial_attention_bridge_forward.1} parent=11 // pred_check
          %p303 = pneg %p244
        $region38: #{spatial_attention_bridge_forward.1} parent=11 // pred_check_branch
          %305 = sbr.rel (%p303) target = $region40
        $region39: #{spatial_attention_bridge_forward.1} parent=11 // pred_region
          _
        $region40: #{spatial_attention_bridge_forward.1} parent=11 // pred_fallthru
          _
      $region12: #{spatial_attention_bridge_forward.1} parent=5 // pred_fallthru
        _
      %p306 = scmp.lt.s32.totalorder %s19, 2
      // Predicated region
      $region41: #{spatial_attention_bridge_forward.1} parent=5 // pred_check
        %p307 = pneg %p306
      $region42: #{spatial_attention_bridge_forward.1} parent=5 // pred_check_branch
        %309 = sbr.rel (%p307) target = $region44
      $region43: #{spatial_attention_bridge_forward.1} parent=5 // pred_region
        // Predicated region
        $region45: #{spatial_attention_bridge_forward.1} parent=43 // pred_check
          %p310 = pneg %p39
        $region46: #{spatial_attention_bridge_forward.1} parent=43 // pred_check_branch
          %312 = sbr.rel (%p310) target = $region48
        $region47: #{spatial_attention_bridge_forward.1} parent=43 // pred_region
          %p313 = scmp.lt.s32.totalorder %s19, 1
          %s314 = scalar_select %p313, %s19, 1
          %s315 = smul.addr %s314, 8
          %s316 = smul.addr %s315, 8
          %s317 = scalar_lea.vmem %s0, %s316
        $region48: #{spatial_attention_bridge_forward.1} parent=43 // pred_fallthru
          _
        // Predicated region
        $region49: #{spatial_attention_bridge_forward.1} parent=43 // pred_check
          %p318 = pneg %p65
        $region50: #{spatial_attention_bridge_forward.1} parent=43 // pred_check_branch
          %320 = sbr.rel (%p318) target = $region52
        $region51: #{spatial_attention_bridge_forward.1} parent=43 // pred_region
          %p321 = scmp.lt.s32.totalorder %s19, 1
          %s322 = scalar_select %p321, %s19, 1
          %s323 = smul.addr %s322, 4
          %s324 = smul.addr %s323, 8
          %s325 = scalar_lea.vmem %s1, %s324
        $region52: #{spatial_attention_bridge_forward.1} parent=43 // pred_fallthru
          _
        // Predicated region
        $region53: #{spatial_attention_bridge_forward.1} parent=43 // pred_check
          %p326 = pneg %p91
        $region54: #{spatial_attention_bridge_forward.1} parent=43 // pred_check_branch
          %328 = sbr.rel (%p326) target = $region56
        $region55: #{spatial_attention_bridge_forward.1} parent=43 // pred_region
          %p329 = scmp.lt.s32.totalorder %s19, 1
          %s330 = scalar_select %p329, %s19, 1
          %s331 = smul.addr %s330, 32
          %s332 = smul.addr %s331, 8
          %s333 = scalar_lea.vmem %s2, %s332
        $region56: #{spatial_attention_bridge_forward.1} parent=43 // pred_fallthru
          _
      $region44: #{spatial_attention_bridge_forward.1} parent=5 // pred_fallthru
        _
      %p334 = scmp.le.s32.totalorder 1, %s19
      %p335 = scmp.lt.s32.totalorder %s19, 3
      %p336 = pnand %p334, %p335
      %p337 = pneg %p336
      // Predicated region
      $region57: #{spatial_attention_bridge_forward.1} parent=5 // pred_check
        _
      $region58: #{spatial_attention_bridge_forward.1} parent=5 // pred_check_branch
        %339 = sbr.rel (%p336) target = $region60
      $region59: #{spatial_attention_bridge_forward.1} parent=5 // pred_region
        %s340 = ssub.s32 %s19, 1
        %p341 = scmp.lt.s32.totalorder %s24, 1
        %s342 = scalar_select %p341, %s24, 1
        %s343 = smul.addr %s342, 8
        %s344 = smul.addr %s343, 8
        %s345 = scalar_lea.vmem %s0, %s344
        %p346 = pneg %p45
        %p347 = pneg %p42
        %p348 = scmp.lt.s32.totalorder %s24, 1
        %s349 = scalar_select %p348, %s24, 1
        %s350 = smul.addr %s349, 4
        %s351 = smul.addr %s350, 8
        %s352 = scalar_lea.vmem %s1, %s351
        %p353 = pneg %p71
        %p354 = pneg %p68
        %p355 = scmp.lt.s32.totalorder %s24, 1
        %s356 = scalar_select %p355, %s24, 1
        %s357 = smul.addr %s356, 32
        %s358 = smul.addr %s357, 8
        %s359 = scalar_lea.vmem %s2, %s358
        %p360 = pneg %p97
        %p361 = pneg %p94
        %p362 = pneg %p118
        %p363 = pneg %p115
        %p364 = pneg %p139
        %p365 = pneg %p136
        %p366 = pneg %p160
        %p367 = pneg %p157
        %p368 = pneg %p181
        %p369 = pneg %p178
        %p370 = pneg %p202
        %p371 = pneg %p199
        %p372 = pneg %p223
        %p373 = pneg %p220
        %p374 = pneg %p244
        %p375 = pneg %p241
        %p376 = pneg %p270
        %p377 = pneg %p267
        %s378 = sand.u32 %s257, 1
        %s379 = scalar_lea.sflag [#allocation4], %s378
        %s380 = sand.u32 %s257, 1
        %s381 = smul.addr %s380, 48
        %s382 = scalar_lea.vmem [#allocation3], %s381
        %p383 = scmp.lt.s32.totalorder %s24, 1
        %s384 = scalar_select %p383, %s24, 1
        %s385 = smul.addr %s384, 8
        %s386 = smul.addr %s385, 8
        %s387 = scalar_lea.vmem %s0, %s386
        %p388 = scmp.lt.s32.totalorder %s24, 1
        %s389 = scalar_select %p388, %s24, 1
        %s390 = smul.addr %s389, 4
        %s391 = smul.addr %s390, 8
        %s392 = scalar_lea.vmem %s1, %s391
        %p393 = scmp.lt.s32.totalorder %s24, 1
        %s394 = scalar_select %p393, %s24, 1
        %s395 = smul.addr %s394, 32
        %s396 = smul.addr %s395, 8
        %s397 = scalar_lea.vmem %s2, %s396
        %v398 = vld [vmem:[%s3] sm:$0xff]
        %v399 = vld [vmem:[%s3 + $0x8] sm:$0xff]
        %v400 = vld [vmem:[%s3 + $0x10] sm:$0x3f]
        %v401 = vld [vmem:[%s4] sm:$0xff]
        %v402 = vld [vmem:[%s4 + $0x8] sm:$0xff]
        %v403 = vld [vmem:[%s4 + $0x10] sm:$0x3f]
        %v404 = vld [vmem:[%s5] sm:$0xff]
        %v405 = vld [vmem:[%s5 + $0x8] sm:$0xff]
        %v406 = vld [vmem:[%s5 + $0x10] sm:$0xff]
        %v407 = vld [vmem:[%s5 + $0x18] sm:$0xff]
        %v408 = vld [vmem:[%s5 + $0x20] sm:$0x3f]
        %v409 = vld [vmem:[%s5 + $0x28] sm:$0x3f]
        %v410 = vld [vmem:[%s6] sm:$0xff]
        %v411 = vld [vmem:[%s6 + $0x8] sm:$0xff]
        %v412 = vld [vmem:[%s7] sm:$0xff]
        %v413 = vld [vmem:[%s8] sm:$0xff]
        %v414 = vld [vmem:[%s8 + $0x8] sm:$0xff]
        %v415 = vld [vmem:[%s8 + $0x10] sm:$0xff]
        %v416 = vld [vmem:[%s8 + $0x18] sm:$0xff]
        %v417 = vld [vmem:[%s9] sm:$0xff]
        %v418 = vld [vmem:[%s9 + $0x8] sm:$0xff]
        %v419 = vld [vmem:[%s9 + $0x10] sm:$0xff]
        %v420 = vld [vmem:[%s9 + $0x18] sm:$0xff]
        %v421 = vld [vmem:[%s9 + $0x20] sm:$0xff]
        %v422 = vld [vmem:[%s9 + $0x28] sm:$0xff]
        %v423 = vld [vmem:[%s9 + $0x30] sm:$0xff]
        %v424 = vld [vmem:[%s9 + $0x38] sm:$0xff]
        %v425 = vld [vmem:[%s9 + $0x40] sm:$0xff]
        %v426 = vld [vmem:[%s9 + $0x48] sm:$0xff]
        %v427 = vld [vmem:[%s9 + $0x50] sm:$0xff]
        %v428 = vld [vmem:[%s9 + $0x58] sm:$0xff]
        %v429 = vld [vmem:[%s9 + $0x60] sm:$0xff]
        %v430 = vld [vmem:[%s9 + $0x68] sm:$0xff]
        %v431 = vld [vmem:[%s9 + $0x70] sm:$0xff]
        %v432 = vld [vmem:[%s9 + $0x78] sm:$0xff]
        %v433 = vld [vmem:[%s9 + $0x80] sm:$0xff]
        %v434 = vld [vmem:[%s9 + $0x88] sm:$0xff]
        %v435 = vld [vmem:[%s9 + $0x90] sm:$0xff]
        %v436 = vld [vmem:[%s9 + $0x98] sm:$0xff]
        %v437 = vld [vmem:[%s9 + $0xa0] sm:$0xff]
        %v438 = vld [vmem:[%s9 + $0xa8] sm:$0xff]
        %v439 = vld [vmem:[%s9 + $0xb0] sm:$0xff]
        %v440 = vld [vmem:[%s9 + $0xb8] sm:$0xff]
        %v441 = vld [vmem:[%s9 + $0xc0] sm:$0xff]
        %v442 = vld [vmem:[%s9 + $0xc8] sm:$0xff]
        %v443 = vld [vmem:[%s9 + $0xd0] sm:$0xff]
        %v444 = vld [vmem:[%s9 + $0xd8] sm:$0xff]
        %v445 = vld [vmem:[%s9 + $0xe0] sm:$0xff]
        %v446 = vld [vmem:[%s9 + $0xe8] sm:$0xff]
        %v447 = vld [vmem:[%s9 + $0xf0] sm:$0xff]
        %v448 = vld [vmem:[%s9 + $0xf8] sm:$0xff]
        %v449 = vld [vmem:[%s9 + $0x100] sm:$0xff]
        %v450 = vld [vmem:[%s9 + $0x108] sm:$0xff]
        %v451 = vld [vmem:[%s9 + $0x110] sm:$0xff]
        %v452 = vld [vmem:[%s9 + $0x118] sm:$0xff]
        %v453 = vld [vmem:[%s9 + $0x120] sm:$0xff]
        %v454 = vld [vmem:[%s9 + $0x128] sm:$0xff]
        %v455 = vld [vmem:[%s9 + $0x130] sm:$0xff]
        %v456 = vld [vmem:[%s9 + $0x138] sm:$0xff]
        %v457 = vld [vmem:[%s9 + $0x140] sm:$0xff]
        %v458 = vld [vmem:[%s9 + $0x148] sm:$0xff]
        %v459 = vld [vmem:[%s387] sm:$0xff]
        %v460 = vld [vmem:[%s387 + $0x8] sm:$0xff]
        %v461 = vld [vmem:[%s387 + $0x10] sm:$0xff]
        %v462 = vld [vmem:[%s387 + $0x18] sm:$0xff]
        %v463 = vld [vmem:[%s387 + $0x20] sm:$0xff]
        %v464 = vld [vmem:[%s387 + $0x28] sm:$0xff]
        %v465 = vld [vmem:[%s387 + $0x30] sm:$0xff]
        %v466 = vld [vmem:[%s387 + $0x38] sm:$0xff]
        %vm467 = vcmask 523264
        %v469 = vsel %vm467, %v398, 0
        %v472 = vsel %vm467, %v399, 0
        %v475 = vsel %vm467, %v400, 0
        %477 = vmatprep.subr.mxu0 0.0
        %478 = vmatpush1.msra.mxu0 %v459
        %479 = vmatprep.subr.mxu0 0.0
        %480 = vmatpush1.msra.mxu0 %v460
        %481 = vmatprep.subr.mxu0 0.0
        %482 = vmatpush1.msra.mxu0 %v461
        %483 = vmatprep.subr.mxu0 0.0
        %484 = vmatpush1.msra.mxu0 %v462
        %485 = vmatprep.subr.mxu0 0.0
        %486 = vmatpush1.msra.mxu0 %v463
        %487 = vmatprep.subr.mxu0 0.0
        %488 = vmatpush1.msra.mxu0 %v464
        %489 = vmatprep.subr.mxu0 0.0
        %490 = vmatpush1.msra.mxu0 %v465
        %491 = vmatprep.subr.mxu0 0.0
        %492 = vmatpush1.msra.mxu0 %v466
        %493 = vmatprep.subr.mxu0 0.0
        %494 = vmatpush1.msra.mxu0 0.0
        %495 = vmatprep.subr.mxu0 0.0
        %496 = vmatpush1.msra.mxu0 0.0
        %497 = vmatprep.subr.mxu0 0.0
        %498 = vmatpush1.msra.mxu0 0.0
        %499 = vmatprep.subr.mxu0 0.0
        %500 = vmatpush1.msra.mxu0 0.0
        %501 = vmatprep.subr.mxu0 0.0
        %502 = vmatpush1.msra.mxu0 0.0
        %503 = vmatprep.subr.mxu0 0.0
        %504 = vmatpush1.msra.mxu0 0.0
        %505 = vmatprep.subr.mxu0 0.0
        %506 = vmatpush1.msra.mxu0 0.0
        %507 = vmatprep.subr.mxu0 0.0
        %508 = vmatpush1.msra.mxu0 0.0
        %509 = vmatprep.subr.mxu0 0.0
        %510 = vmatpush1.msra.mxu0 0.0
        %511 = vmatprep.subr.mxu0 0.0
        %512 = vmatpush1.msra.mxu0 0.0
        %513 = vmatprep.subr.mxu0 0.0
        %514 = vmatpush1.msra.mxu0 0.0
        %515 = vmatprep.subr.mxu0 0.0
        %516 = vmatpush1.msra.mxu0 0.0
        %517 = vmatprep.subr.mxu0 0.0
        %518 = vmatpush1.msra.mxu0 0.0
        %519 = vmatprep.subr.mxu0 0.0
        %520 = vmatpush1.msra.mxu0 0.0
        %521 = vmatprep.subr.mxu0 0.0
        %522 = vmatpush1.msra.mxu0 0.0
        %523 = vmatprep.subr.mxu0 0.0
        %524 = vmatpush1.msra.mxu0 0.0
        %525 = vmatprep.subr.mxu0 0.0
        %526 = vmatpush1.msra.mxu0 0.0
        %527 = vmatprep.subr.mxu0 0.0
        %528 = vmatpush1.msra.mxu0 0.0
        %529 = vmatprep.subr.mxu0 0.0
        %530 = vmatpush1.msra.mxu0 0.0
        %531 = vmatprep.subr.mxu0 0.0
        %532 = vmatpush1.msra.mxu0 0.0
        %533 = vmatprep.subr.mxu0 0.0
        %534 = vmatpush1.msra.mxu0 0.0
        %535 = vmatprep.subr.mxu0 0.0
        %536 = vmatpush1.msra.mxu0 0.0
        %537 = vmatprep.subr.mxu0 0.0
        %538 = vmatpush1.msra.mxu0 0.0
        %539 = vmatprep.subr.mxu0 0.0
        %540 = vmatpush1.msra.mxu0 0.0
        %541 = vmatprep.mubr.f32.mxu0 0.0
        %542 = vmatmul.mubr.f32.gmra.mrb[0].mxu0 %v469
        %v543 = vpop.f32.mrb[0].mxu0
        %v544 = vadd.f32 0.0, %v543
        %v545 = vpop.f32.mrb[0].mxu0
        %546 = vmatprep.mubr.f32.mxu0 0.0
        %547 = vmatmul.mubr.f32.gmra.mrb[0].mxu0 %v472
        %v548 = vpop.f32.mrb[0].mxu0
        %v549 = vadd.f32 0.0, %v548
        %v550 = vpop.f32.mrb[0].mxu0
        %551 = vmatprep.mubr.f32.mxu0 0.0
        %552 = vmatmul.mubr.f32.gmra.mrb[0].mxu0 %v475
        %v553 = vpop.f32.mrb[0].mxu0
        %v554 = vadd.f32 0.0, %v553
        %v555 = vpop.f32.mrb[0].mxu0
        %556 = vdwg.mxu0
        %vm557 = vcmask 130048
        %v559 = vsel %vm557, %v544, 0
        %v562 = vsel %vm557, %v549, 0
        %v565 = vsel %vm557, %v554, 0
        %567 = vmatprep.subr.mxu0 0.0
        %568 = vmatpush1.msra.mxu0 %v410
        %569 = vmatprep.subr.mxu0 0.0
        %570 = vmatpush1.msra.mxu0 %v411
        %571 = vmatprep.subr.mxu0 0.0
        %572 = vmatpush1.msra.mxu0 0.0
        %573 = vmatprep.subr.mxu0 0.0
        %574 = vmatpush1.msra.mxu0 0.0
        %575 = vmatprep.subr.mxu0 0.0
        %576 = vmatpush1.msra.mxu0 0.0
        %577 = vmatprep.subr.mxu0 0.0
        %578 = vmatpush1.msra.mxu0 0.0
        %579 = vmatprep.subr.mxu0 0.0
        %580 = vmatpush1.msra.mxu0 0.0
        %581 = vmatprep.subr.mxu0 0.0
        %582 = vmatpush1.msra.mxu0 0.0
        %583 = vmatprep.subr.mxu0 0.0
        %584 = vmatpush1.msra.mxu0 0.0
        %585 = vmatprep.subr.mxu0 0.0
        %586 = vmatpush1.msra.mxu0 0.0
        %587 = vmatprep.subr.mxu0 0.0
        %588 = vmatpush1.msra.mxu0 0.0
        %589 = vmatprep.subr.mxu0 0.0
        %590 = vmatpush1.msra.mxu0 0.0
        %591 = vmatprep.subr.mxu0 0.0
        %592 = vmatpush1.msra.mxu0 0.0
        %593 = vmatprep.subr.mxu0 0.0
        %594 = vmatpush1.msra.mxu0 0.0
        %595 = vmatprep.subr.mxu0 0.0
        %596 = vmatpush1.msra.mxu0 0.0
        %597 = vmatprep.subr.mxu0 0.0
        %598 = vmatpush1.msra.mxu0 0.0
        %599 = vmatprep.subr.mxu0 0.0
        %600 = vmatpush1.msra.mxu0 0.0
        %601 = vmatprep.subr.mxu0 0.0
        %602 = vmatpush1.msra.mxu0 0.0
        %603 = vmatprep.subr.mxu0 0.0
        %604 = vmatpush1.msra.mxu0 0.0
        %605 = vmatprep.subr.mxu0 0.0
        %606 = vmatpush1.msra.mxu0 0.0
        %607 = vmatprep.subr.mxu0 0.0
        %608 = vmatpush1.msra.mxu0 0.0
        %609 = vmatprep.subr.mxu0 0.0
        %610 = vmatpush1.msra.mxu0 0.0
        %611 = vmatprep.subr.mxu0 0.0
        %612 = vmatpush1.msra.mxu0 0.0
        %613 = vmatprep.subr.mxu0 0.0
        %614 = vmatpush1.msra.mxu0 0.0
        %615 = vmatprep.subr.mxu0 0.0
        %616 = vmatpush1.msra.mxu0 0.0
        %617 = vmatprep.subr.mxu0 0.0
        %618 = vmatpush1.msra.mxu0 0.0
        %619 = vmatprep.subr.mxu0 0.0
        %620 = vmatpush1.msra.mxu0 0.0
        %621 = vmatprep.subr.mxu0 0.0
        %622 = vmatpush1.msra.mxu0 0.0
        %623 = vmatprep.subr.mxu0 0.0
        %624 = vmatpush1.msra.mxu0 0.0
        %625 = vmatprep.subr.mxu0 0.0
        %626 = vmatpush1.msra.mxu0 0.0
        %627 = vmatprep.subr.mxu0 0.0
        %628 = vmatpush1.msra.mxu0 0.0
        %629 = vmatprep.subr.mxu0 0.0
        %630 = vmatpush1.msra.mxu0 0.0
        %631 = vmatprep.mubr.f32.mxu0 0.0
        %632 = vmatmul.mubr.f32.gmra.mrb[0].mxu0 %v559
        %v633 = vpop.f32.mrb[0].mxu0
        %v634 = vadd.f32 0.0, %v633
        %v635 = vpop.f32.mrb[0].mxu0
        %636 = vmatprep.mubr.f32.mxu0 0.0
        %637 = vmatmul.mubr.f32.gmra.mrb[0].mxu0 %v562
        %v638 = vpop.f32.mrb[0].mxu0
        %v639 = vadd.f32 0.0, %v638
        %v640 = vpop.f32.mrb[0].mxu0
        %641 = vmatprep.mubr.f32.mxu0 0.0
        %642 = vmatmul.mubr.f32.gmra.mrb[0].mxu0 %v565
        %v643 = vpop.f32.mrb[0].mxu0
        %v644 = vadd.f32 0.0, %v643
        %v645 = vpop.f32.mrb[0].mxu0
        %646 = vdwg.mxu0
        %v647 = vld [vmem:[%s392] sm:$0xff]
        %v648 = vld [vmem:[%s392 + $0x8] sm:$0xff]
        %v649 = vld [vmem:[%s392 + $0x10] sm:$0xff]
        %v650 = vld [vmem:[%s392 + $0x18] sm:$0xff]
        %vm651 = vcmask 261120
        %v653 = vsel %vm651, %v401, 0
        %v656 = vsel %vm651, %v402, 0
        %v659 = vsel %vm651, %v403, 0
        %661 = vmatprep.subr.mxu0 0.0
        %662 = vmatpush1.msra.mxu0 %v647
        %663 = vmatprep.subr.mxu0 0.0
        %664 = vmatpush1.msra.mxu0 %v648
        %665 = vmatprep.subr.mxu0 0.0
        %666 = vmatpush1.msra.mxu0 %v649
        %667 = vmatprep.subr.mxu0 0.0
        %668 = vmatpush1.msra.mxu0 %v650
        %669 = vmatprep.subr.mxu0 0.0
        %670 = vmatpush1.msra.mxu0 0.0
        %671 = vmatprep.subr.mxu0 0.0
        %672 = vmatpush1.msra.mxu0 0.0
        %673 = vmatprep.subr.mxu0 0.0
        %674 = vmatpush1.msra.mxu0 0.0
        %675 = vmatprep.subr.mxu0 0.0
        %676 = vmatpush1.msra.mxu0 0.0
        %677 = vmatprep.subr.mxu0 0.0
        %678 = vmatpush1.msra.mxu0 0.0
        %679 = vmatprep.subr.mxu0 0.0
        %680 = vmatpush1.msra.mxu0 0.0
        %681 = vmatprep.subr.mxu0 0.0
        %682 = vmatpush1.msra.mxu0 0.0
        %683 = vmatprep.subr.mxu0 0.0
        %684 = vmatpush1.msra.mxu0 0.0
        %685 = vmatprep.subr.mxu0 0.0
        %686 = vmatpush1.msra.mxu0 0.0
        %687 = vmatprep.subr.mxu0 0.0
        %688 = vmatpush1.msra.mxu0 0.0
        %689 = vmatprep.subr.mxu0 0.0
        %690 = vmatpush1.msra.mxu0 0.0
        %691 = vmatprep.subr.mxu0 0.0
        %692 = vmatpush1.msra.mxu0 0.0
        %693 = vmatprep.subr.mxu0 0.0
        %694 = vmatpush1.msra.mxu0 0.0
        %695 = vmatprep.subr.mxu0 0.0
        %696 = vmatpush1.msra.mxu0 0.0
        %697 = vmatprep.subr.mxu0 0.0
        %698 = vmatpush1.msra.mxu0 0.0
        %699 = vmatprep.subr.mxu0 0.0
        %700 = vmatpush1.msra.mxu0 0.0
        %701 = vmatprep.subr.mxu0 0.0
        %702 = vmatpush1.msra.mxu0 0.0
        %703 = vmatprep.subr.mxu0 0.0
        %704 = vmatpush1.msra.mxu0 0.0
        %705 = vmatprep.subr.mxu0 0.0
        %706 = vmatpush1.msra.mxu0 0.0
        %707 = vmatprep.subr.mxu0 0.0
        %708 = vmatpush1.msra.mxu0 0.0
        %709 = vmatprep.subr.mxu0 0.0
        %710 = vmatpush1.msra.mxu0 0.0
        %711 = vmatprep.subr.mxu0 0.0
        %712 = vmatpush1.msra.mxu0 0.0
        %713 = vmatprep.subr.mxu0 0.0
        %714 = vmatpush1.msra.mxu0 0.0
        %715 = vmatprep.subr.mxu0 0.0
        %716 = vmatpush1.msra.mxu0 0.0
        %717 = vmatprep.subr.mxu0 0.0
        %718 = vmatpush1.msra.mxu0 0.0
        %719 = vmatprep.subr.mxu0 0.0
        %720 = vmatpush1.msra.mxu0 0.0
        %721 = vmatprep.subr.mxu0 0.0
        %722 = vmatpush1.msra.mxu0 0.0
        %723 = vmatprep.subr.mxu0 0.0
        %724 = vmatpush1.msra.mxu0 0.0
        %725 = vmatprep.mubr.f32.mxu0 0.0
        %726 = vmatmul.mubr.f32.gmra.mrb[0].mxu0 %v653
        %v727 = vpop.f32.mrb[0].mxu0
        %v728 = vadd.f32 0.0, %v727
        %v729 = vpop.f32.mrb[0].mxu0
        %730 = vmatprep.mubr.f32.mxu0 0.0
        %731 = vmatmul.mubr.f32.gmra.mrb[0].mxu0 %v656
        %v732 = vpop.f32.mrb[0].mxu0
        %v733 = vadd.f32 0.0, %v732
        %v734 = vpop.f32.mrb[0].mxu0
        %735 = vmatprep.mubr.f32.mxu0 0.0
        %736 = vmatmul.mubr.f32.gmra.mrb[0].mxu0 %v659
        %v737 = vpop.f32.mrb[0].mxu0
        %v738 = vadd.f32 0.0, %v737
        %v739 = vpop.f32.mrb[0].mxu0
        %740 = vdwg.mxu0
        %vm741 = vcmask 64512
        %v743 = vsel %vm741, %v728, 0
        %v746 = vsel %vm741, %v733, 0
        %v749 = vsel %vm741, %v738, 0
        %751 = vmatprep.subr.mxu0 0.0
        %752 = vmatpush1.msra.mxu0 %v412
        %753 = vmatprep.subr.mxu0 0.0
        %754 = vmatpush1.msra.mxu0 0.0
        %755 = vmatprep.subr.mxu0 0.0
        %756 = vmatpush1.msra.mxu0 0.0
        %757 = vmatprep.subr.mxu0 0.0
        %758 = vmatpush1.msra.mxu0 0.0
        %759 = vmatprep.subr.mxu0 0.0
        %760 = vmatpush1.msra.mxu0 0.0
        %761 = vmatprep.subr.mxu0 0.0
        %762 = vmatpush1.msra.mxu0 0.0
        %763 = vmatprep.subr.mxu0 0.0
        %764 = vmatpush1.msra.mxu0 0.0
        %765 = vmatprep.subr.mxu0 0.0
        %766 = vmatpush1.msra.mxu0 0.0
        %767 = vmatprep.subr.mxu0 0.0
        %768 = vmatpush1.msra.mxu0 0.0
        %769 = vmatprep.subr.mxu0 0.0
        %770 = vmatpush1.msra.mxu0 0.0
        %771 = vmatprep.subr.mxu0 0.0
        %772 = vmatpush1.msra.mxu0 0.0
        %773 = vmatprep.subr.mxu0 0.0
        %774 = vmatpush1.msra.mxu0 0.0
        %775 = vmatprep.subr.mxu0 0.0
        %776 = vmatpush1.msra.mxu0 0.0
        %777 = vmatprep.subr.mxu0 0.0
        %778 = vmatpush1.msra.mxu0 0.0
        %779 = vmatprep.subr.mxu0 0.0
        %780 = vmatpush1.msra.mxu0 0.0
        %781 = vmatprep.subr.mxu0 0.0
        %782 = vmatpush1.msra.mxu0 0.0
        %783 = vmatprep.subr.mxu0 0.0
        %784 = vmatpush1.msra.mxu0 0.0
        %785 = vmatprep.subr.mxu0 0.0
        %786 = vmatpush1.msra.mxu0 0.0
        %787 = vmatprep.subr.mxu0 0.0
        %788 = vmatpush1.msra.mxu0 0.0
        %789 = vmatprep.subr.mxu0 0.0
        %790 = vmatpush1.msra.mxu0 0.0
        %791 = vmatprep.subr.mxu0 0.0
        %792 = vmatpush1.msra.mxu0 0.0
        %793 = vmatprep.subr.mxu0 0.0
        %794 = vmatpush1.msra.mxu0 0.0
        %795 = vmatprep.subr.mxu0 0.0
        %796 = vmatpush1.msra.mxu0 0.0
        %797 = vmatprep.subr.mxu0 0.0
        %798 = vmatpush1.msra.mxu0 0.0
        %799 = vmatprep.subr.mxu0 0.0
        %800 = vmatpush1.msra.mxu0 0.0
        %801 = vmatprep.subr.mxu0 0.0
        %802 = vmatpush1.msra.mxu0 0.0
        %803 = vmatprep.subr.mxu0 0.0
        %804 = vmatpush1.msra.mxu0 0.0
        %805 = vmatprep.subr.mxu0 0.0
        %806 = vmatpush1.msra.mxu0 0.0
        %807 = vmatprep.subr.mxu0 0.0
        %808 = vmatpush1.msra.mxu0 0.0
        %809 = vmatprep.subr.mxu0 0.0
        %810 = vmatpush1.msra.mxu0 0.0
        %811 = vmatprep.subr.mxu0 0.0
        %812 = vmatpush1.msra.mxu0 0.0
        %813 = vmatprep.subr.mxu0 0.0
        %814 = vmatpush1.msra.mxu0 0.0
        %815 = vmatprep.mubr.f32.mxu0 0.0
        %816 = vmatmul.mubr.f32.gmra.mrb[0].mxu0 %v743
        %v817 = vpop.f32.mrb[0].mxu0
        %v818 = vadd.f32 0.0, %v817
        %v819 = vpop.f32.mrb[0].mxu0
        %820 = vmatprep.mubr.f32.mxu0 0.0
        %821 = vmatmul.mubr.f32.gmra.mrb[0].mxu0 %v746
        %v822 = vpop.f32.mrb[0].mxu0
        %v823 = vadd.f32 0.0, %v822
        %v824 = vpop.f32.mrb[0].mxu0
        %825 = vmatprep.mubr.f32.mxu0 0.0
        %826 = vmatmul.mubr.f32.gmra.mrb[0].mxu0 %v749
        %v827 = vpop.f32.mrb[0].mxu0
        %v828 = vadd.f32 0.0, %v827
        %v829 = vpop.f32.mrb[0].mxu0
        %830 = vdwg.mxu0
        %v831 = vld [vmem:[%s397] sm:$0xff]
        %v832 = vld [vmem:[%s397 + $0x8] sm:$0xff]
        %v833 = vld [vmem:[%s397 + $0x10] sm:$0xff]
        %v834 = vld [vmem:[%s397 + $0x18] sm:$0xff]
        %v835 = vld [vmem:[%s397 + $0x20] sm:$0xff]
        %v836 = vld [vmem:[%s397 + $0x28] sm:$0xff]
        %v837 = vld [vmem:[%s397 + $0x30] sm:$0xff]
        %v838 = vld [vmem:[%s397 + $0x38] sm:$0xff]
        %v839 = vld [vmem:[%s397 + $0x40] sm:$0xff]
        %v840 = vld [vmem:[%s397 + $0x48] sm:$0xff]
        %v841 = vld [vmem:[%s397 + $0x50] sm:$0xff]
        %v842 = vld [vmem:[%s397 + $0x58] sm:$0xff]
        %v843 = vld [vmem:[%s397 + $0x60] sm:$0xff]
        %v844 = vld [vmem:[%s397 + $0x68] sm:$0xff]
        %v845 = vld [vmem:[%s397 + $0x70] sm:$0xff]
        %v846 = vld [vmem:[%s397 + $0x78] sm:$0xff]
        %v847 = vld [vmem:[%s397 + $0x80] sm:$0xff]
        %v848 = vld [vmem:[%s397 + $0x88] sm:$0xff]
        %v849 = vld [vmem:[%s397 + $0x90] sm:$0xff]
        %v850 = vld [vmem:[%s397 + $0x98] sm:$0xff]
        %v851 = vld [vmem:[%s397 + $0xa0] sm:$0xff]
        %v852 = vld [vmem:[%s397 + $0xa8] sm:$0xff]
        %v853 = vld [vmem:[%s397 + $0xb0] sm:$0xff]
        %v854 = vld [vmem:[%s397 + $0xb8] sm:$0xff]
        %v855 = vld [vmem:[%s397 + $0xc0] sm:$0xff]
        %v856 = vld [vmem:[%s397 + $0xc8] sm:$0xff]
        %v857 = vld [vmem:[%s397 + $0xd0] sm:$0xff]
        %v858 = vld [vmem:[%s397 + $0xd8] sm:$0xff]
        %v859 = vld [vmem:[%s397 + $0xe0] sm:$0xff]
        %v860 = vld [vmem:[%s397 + $0xe8] sm:$0xff]
        %v861 = vld [vmem:[%s397 + $0xf0] sm:$0xff]
        %v862 = vld [vmem:[%s397 + $0xf8] sm:$0xff]
        %863 = vmatprep.subr.mxu0 0.0
        %864 = vmatpush1.msra.mxu0 %v831
        %865 = vmatprep.subr.mxu0 0.0
        %866 = vmatpush1.msra.mxu0 %v832
        %867 = vmatprep.subr.mxu0 0.0
        %868 = vmatpush1.msra.mxu0 %v833
        %869 = vmatprep.subr.mxu0 0.0
        %870 = vmatpush1.msra.mxu0 %v834
        %871 = vmatprep.subr.mxu0 0.0
        %872 = vmatpush1.msra.mxu0 %v835
        %873 = vmatprep.subr.mxu0 0.0
        %874 = vmatpush1.msra.mxu0 %v836
        %875 = vmatprep.subr.mxu0 0.0
        %876 = vmatpush1.msra.mxu0 %v837
        %877 = vmatprep.subr.mxu0 0.0
        %878 = vmatpush1.msra.mxu0 %v838
        %879 = vmatprep.subr.mxu0 0.0
        %880 = vmatpush1.msra.mxu0 %v839
        %881 = vmatprep.subr.mxu0 0.0
        %882 = vmatpush1.msra.mxu0 %v840
        %883 = vmatprep.subr.mxu0 0.0
        %884 = vmatpush1.msra.mxu0 %v841
        %885 = vmatprep.subr.mxu0 0.0
        %886 = vmatpush1.msra.mxu0 %v842
        %887 = vmatprep.subr.mxu0 0.0
        %888 = vmatpush1.msra.mxu0 %v843
        %889 = vmatprep.subr.mxu0 0.0
        %890 = vmatpush1.msra.mxu0 %v844
        %891 = vmatprep.subr.mxu0 0.0
        %892 = vmatpush1.msra.mxu0 %v845
        %893 = vmatprep.subr.mxu0 0.0
        %894 = vmatpush1.msra.mxu0 %v846
        %895 = vmatprep.subr.mxu0 0.0
        %896 = vmatpush1.msra.mxu0 %v847
        %897 = vmatprep.subr.mxu0 0.0
        %898 = vmatpush1.msra.mxu0 %v848
        %899 = vmatprep.subr.mxu0 0.0
        %900 = vmatpush1.msra.mxu0 %v849
        %901 = vmatprep.subr.mxu0 0.0
        %902 = vmatpush1.msra.mxu0 %v850
        %903 = vmatprep.subr.mxu0 0.0
        %904 = vmatpush1.msra.mxu0 %v851
        %905 = vmatprep.subr.mxu0 0.0
        %906 = vmatpush1.msra.mxu0 %v852
        %907 = vmatprep.subr.mxu0 0.0
        %908 = vmatpush1.msra.mxu0 %v853
        %909 = vmatprep.subr.mxu0 0.0
        %910 = vmatpush1.msra.mxu0 %v854
        %911 = vmatprep.subr.mxu0 0.0
        %912 = vmatpush1.msra.mxu0 %v855
        %913 = vmatprep.subr.mxu0 0.0
        %914 = vmatpush1.msra.mxu0 %v856
        %915 = vmatprep.subr.mxu0 0.0
        %916 = vmatpush1.msra.mxu0 %v857
        %917 = vmatprep.subr.mxu0 0.0
        %918 = vmatpush1.msra.mxu0 %v858
        %919 = vmatprep.subr.mxu0 0.0
        %920 = vmatpush1.msra.mxu0 %v859
        %921 = vmatprep.subr.mxu0 0.0
        %922 = vmatpush1.msra.mxu0 %v860
        %923 = vmatprep.subr.mxu0 0.0
        %924 = vmatpush1.msra.mxu0 %v861
        %925 = vmatprep.subr.mxu0 0.0
        %926 = vmatpush1.msra.mxu0 %v862
        %927 = vmatprep.mubr.f32.mxu0 %v405
        %928 = vmatmul.mubr.f32.gmra.mrb[0].mxu0 %v404
        %v929 = vpop.f32.mrb[0].mxu0
        %v930 = vadd.f32 0.0, %v929
        %v931 = vpop.f32.mrb[0].mxu0
        %932 = vmatprep.mubr.f32.mxu0 %v407
        %933 = vmatmul.mubr.f32.gmra.mrb[0].mxu0 %v406
        %v934 = vpop.f32.mrb[0].mxu0
        %v935 = vadd.f32 0.0, %v934
        %v936 = vpop.f32.mrb[0].mxu0
        %937 = vmatprep.mubr.f32.mxu0 %v409
        %938 = vmatmul.mubr.f32.gmra.mrb[0].mxu0 %v408
        %v939 = vpop.f32.mrb[0].mxu0
        %v940 = vadd.f32 0.0, %v939
        %v941 = vpop.f32.mrb[0].mxu0
        %942 = vdwg.mxu0
        %v944 = vsel %vm651, %v930, 0
        %v947 = vsel %vm651, %v935, 0
        %v950 = vsel %vm651, %v940, 0
        %952 = vmatprep.subr.mxu0 0.0
        %953 = vmatpush1.msra.mxu0 %v413
        %954 = vmatprep.subr.mxu0 0.0
        %955 = vmatpush1.msra.mxu0 %v414
        %956 = vmatprep.subr.mxu0 0.0
        %957 = vmatpush1.msra.mxu0 %v415
        %958 = vmatprep.subr.mxu0 0.0
        %959 = vmatpush1.msra.mxu0 %v416
        %960 = vmatprep.subr.mxu0 0.0
        %961 = vmatpush1.msra.mxu0 0.0
        %962 = vmatprep.subr.mxu0 0.0
        %963 = vmatpush1.msra.mxu0 0.0
        %964 = vmatprep.subr.mxu0 0.0
        %965 = vmatpush1.msra.mxu0 0.0
        %966 = vmatprep.subr.mxu0 0.0
        %967 = vmatpush1.msra.mxu0 0.0
        %968 = vmatprep.subr.mxu0 0.0
        %969 = vmatpush1.msra.mxu0 0.0
        %970 = vmatprep.subr.mxu0 0.0
        %971 = vmatpush1.msra.mxu0 0.0
        %972 = vmatprep.subr.mxu0 0.0
        %973 = vmatpush1.msra.mxu0 0.0
        %974 = vmatprep.subr.mxu0 0.0
        %975 = vmatpush1.msra.mxu0 0.0
        %976 = vmatprep.subr.mxu0 0.0
        %977 = vmatpush1.msra.mxu0 0.0
        %978 = vmatprep.subr.mxu0 0.0
        %979 = vmatpush1.msra.mxu0 0.0
        %980 = vmatprep.subr.mxu0 0.0
        %981 = vmatpush1.msra.mxu0 0.0
        %982 = vmatprep.subr.mxu0 0.0
        %983 = vmatpush1.msra.mxu0 0.0
        %984 = vmatprep.subr.mxu0 0.0
        %985 = vmatpush1.msra.mxu0 0.0
        %986 = vmatprep.subr.mxu0 0.0
        %987 = vmatpush1.msra.mxu0 0.0
        %988 = vmatprep.subr.mxu0 0.0
        %989 = vmatpush1.msra.mxu0 0.0
        %990 = vmatprep.subr.mxu0 0.0
        %991 = vmatpush1.msra.mxu0 0.0
        %992 = vmatprep.subr.mxu0 0.0
        %993 = vmatpush1.msra.mxu0 0.0
        %994 = vmatprep.subr.mxu0 0.0
        %995 = vmatpush1.msra.mxu0 0.0
        %996 = vmatprep.subr.mxu0 0.0
        %997 = vmatpush1.msra.mxu0 0.0
        %998 = vmatprep.subr.mxu0 0.0
        %999 = vmatpush1.msra.mxu0 0.0
        %1000 = vmatprep.subr.mxu0 0.0
        %1001 = vmatpush1.msra.mxu0 0.0
        %1002 = vmatprep.subr.mxu0 0.0
        %1003 = vmatpush1.msra.mxu0 0.0
        %1004 = vmatprep.subr.mxu0 0.0
        %1005 = vmatpush1.msra.mxu0 0.0
        %1006 = vmatprep.subr.mxu0 0.0
        %1007 = vmatpush1.msra.mxu0 0.0
        %1008 = vmatprep.subr.mxu0 0.0
        %1009 = vmatpush1.msra.mxu0 0.0
        %1010 = vmatprep.subr.mxu0 0.0
        %1011 = vmatpush1.msra.mxu0 0.0
        %1012 = vmatprep.subr.mxu0 0.0
        %1013 = vmatpush1.msra.mxu0 0.0
        %1014 = vmatprep.subr.mxu0 0.0
        %1015 = vmatpush1.msra.mxu0 0.0
        %1016 = vmatprep.mubr.f32.mxu0 0.0
        %1017 = vmatmul.mubr.f32.gmra.mrb[0].mxu0 %v944
        %v1018 = vpop.f32.mrb[0].mxu0
        %v1019 = vadd.f32 0.0, %v1018
        %v1020 = vpop.f32.mrb[0].mxu0
        %1021 = vmatprep.mubr.f32.mxu0 0.0
        %1022 = vmatmul.mubr.f32.gmra.mrb[0].mxu0 %v947
        %v1023 = vpop.f32.mrb[0].mxu0
        %v1024 = vadd.f32 0.0, %v1023
        %v1025 = vpop.f32.mrb[0].mxu0
        %1026 = vmatprep.mubr.f32.mxu0 0.0
        %1027 = vmatmul.mubr.f32.gmra.mrb[0].mxu0 %v950
        %v1028 = vpop.f32.mrb[0].mxu0
        %v1029 = vadd.f32 0.0, %v1028
        %v1030 = vpop.f32.mrb[0].mxu0
        %1031 = vdwg.mxu0
        %1035 = vrot.lane.b32.xlu0 %v818, 16
        %v1036 = vpop.permute.xlu0 %1035
        %1037 = vrot.lane.b32.xlu0 %v823, 16
        %v1038 = vpop.permute.xlu0 %1037
        %1039 = vrot.lane.b32.xlu0 %v828, 16
        %v1040 = vpop.permute.xlu0 %1039
        %1047 = vrot.lane.b32.xlu0 %v1019, 32
        %v1048 = vpop.permute.xlu0 %1047
        %1049 = vrot.lane.b32.xlu0 %v1024, 32
        %v1050 = vpop.permute.xlu0 %1049
        %1051 = vrot.lane.b32.xlu0 %v1029, 32
        %v1052 = vpop.permute.xlu0 %1051
        %v1056 = vsel %vm557, %v634, %v1036
        %v1057 = vsel %vm557, %v639, %v1038
        %v1058 = vsel %vm557, %v644, %v1040
        %v1059 = vsel %vm651, %v1056, %v1048
        %v1060 = vsel %vm651, %v1057, %v1050
        %v1061 = vsel %vm651, %v1058, %v1052
        %vm1062 = vcmask 392192
        %1063 = vst.msk [vmem:[#allocation2] sm:$0xff] %vm1062, %v1059
        %1064 = vst.msk [vmem:[#allocation2 + $0x8] sm:$0xff] %vm1062, %v1060
        %vm1065 = vcmask 390144
        %1066 = vst.msk [vmem:[#allocation2 + $0x10] sm:$0x3f] %vm1065, %v1061
        %v1067 = vld [vmem:[#allocation2] sm:$0xff]
        %v1068 = vld [vmem:[#allocation2 + $0x8] sm:$0xff]
        %v1069 = vld [vmem:[#allocation2 + $0x1] sm:$0xff]
        %v1070 = vld [vmem:[#allocation2 + $0x9] sm:$0xff]
        %v1071 = vld [vmem:[#allocation2 + $0x2] sm:$0xff]
        %v1072 = vld [vmem:[#allocation2 + $0xa] sm:$0xff]
        %v1074 = vsel %vm1062, %v1071, 0
        %v1077 = vsel %vm1062, %v1072, 0
        %1079 = vmatprep.subr.mxu0 0.0
        %1080 = vmatpush1.msra.mxu0 %v429
        %1081 = vmatprep.subr.mxu0 0.0
        %1082 = vmatpush1.msra.mxu0 %v430
        %1083 = vmatprep.subr.mxu0 0.0
        %1084 = vmatpush1.msra.mxu0 %v431
        %1085 = vmatprep.subr.mxu0 0.0
        %1086 = vmatpush1.msra.mxu0 %v432
        %1087 = vmatprep.subr.mxu0 0.0
        %1088 = vmatpush1.msra.mxu0 %v433
        %1089 = vmatprep.subr.mxu0 0.0
        %1090 = vmatpush1.msra.mxu0 %v434
        %1091 = vmatprep.subr.mxu0 0.0
        %1092 = vmatpush1.msra.mxu0 0.0
        %1093 = vmatprep.subr.mxu0 0.0
        %1094 = vmatpush1.msra.mxu0 0.0
        %1095 = vmatprep.subr.mxu0 0.0
        %1096 = vmatpush1.msra.mxu0 0.0
        %1097 = vmatprep.subr.mxu0 0.0
        %1098 = vmatpush1.msra.mxu0 0.0
        %1099 = vmatprep.subr.mxu0 0.0
        %1100 = vmatpush1.msra.mxu0 0.0
        %1101 = vmatprep.subr.mxu0 0.0
        %1102 = vmatpush1.msra.mxu0 0.0
        %1103 = vmatprep.subr.mxu0 0.0
        %1104 = vmatpush1.msra.mxu0 0.0
        %1105 = vmatprep.subr.mxu0 0.0
        %1106 = vmatpush1.msra.mxu0 0.0
        %1107 = vmatprep.subr.mxu0 0.0
        %1108 = vmatpush1.msra.mxu0 0.0
        %1109 = vmatprep.subr.mxu0 0.0
        %1110 = vmatpush1.msra.mxu0 0.0
        %1111 = vmatprep.subr.mxu0 0.0
        %1112 = vmatpush1.msra.mxu0 0.0
        %1113 = vmatprep.subr.mxu0 0.0
        %1114 = vmatpush1.msra.mxu0 0.0
        %1115 = vmatprep.subr.mxu0 0.0
        %1116 = vmatpush1.msra.mxu0 0.0
        %1117 = vmatprep.subr.mxu0 0.0
        %1118 = vmatpush1.msra.mxu0 0.0
        %1119 = vmatprep.subr.mxu0 0.0
        %1120 = vmatpush1.msra.mxu0 0.0
        %1121 = vmatprep.subr.mxu0 0.0
        %1122 = vmatpush1.msra.mxu0 0.0
        %1123 = vmatprep.subr.mxu0 0.0
        %1124 = vmatpush1.msra.mxu0 0.0
        %1125 = vmatprep.subr.mxu0 0.0
        %1126 = vmatpush1.msra.mxu0 0.0
        %1127 = vmatprep.subr.mxu0 0.0
        %1128 = vmatpush1.msra.mxu0 0.0
        %1129 = vmatprep.subr.mxu0 0.0
        %1130 = vmatpush1.msra.mxu0 0.0
        %1131 = vmatprep.subr.mxu0 0.0
        %1132 = vmatpush1.msra.mxu0 0.0
        %1133 = vmatprep.subr.mxu0 0.0
        %1134 = vmatpush1.msra.mxu0 0.0
        %1135 = vmatprep.subr.mxu0 0.0
        %1136 = vmatpush1.msra.mxu0 0.0
        %1137 = vmatprep.subr.mxu0 0.0
        %1138 = vmatpush1.msra.mxu0 0.0
        %1139 = vmatprep.subr.mxu0 0.0
        %1140 = vmatpush1.msra.mxu0 0.0
        %1141 = vmatprep.subr.mxu0 0.0
        %1142 = vmatpush1.msra.mxu0 0.0
        %1143 = vmatprep.mubr.f32.mxu0 0.0
        %1144 = vmatmul.mubr.f32.gmra.mrb[0].mxu0 %v1074
        %v1145 = vpop.f32.mrb[0].mxu0
        %v1146 = vadd.f32 0.0, %v1145
        %v1147 = vpop.f32.mrb[0].mxu0
        %1148 = vmatprep.mubr.f32.mxu0 0.0
        %1149 = vmatmul.mubr.f32.gmra.mrb[0].mxu0 %v1077
        %v1150 = vpop.f32.mrb[0].mxu0
        %v1151 = vadd.f32 0.0, %v1150
        %v1152 = vpop.f32.mrb[0].mxu0
        %1153 = vdwg.mxu0
        %v1155 = vsel %vm1062, %v1067, 0
        %v1158 = vsel %vm1062, %v1068, 0
        %1160 = vmatprep.subr.mxu0 0.0
        %1161 = vmatpush1.msra.mxu0 %v417
        %1162 = vmatprep.subr.mxu0 0.0
        %1163 = vmatpush1.msra.mxu0 %v418
        %1164 = vmatprep.subr.mxu0 0.0
        %1165 = vmatpush1.msra.mxu0 %v419
        %1166 = vmatprep.subr.mxu0 0.0
        %1167 = vmatpush1.msra.mxu0 %v420
        %1168 = vmatprep.subr.mxu0 0.0
        %1169 = vmatpush1.msra.mxu0 %v421
        %1170 = vmatprep.subr.mxu0 0.0
        %1171 = vmatpush1.msra.mxu0 %v422
        %1172 = vmatprep.subr.mxu0 0.0
        %1173 = vmatpush1.msra.mxu0 0.0
        %1174 = vmatprep.subr.mxu0 0.0
        %1175 = vmatpush1.msra.mxu0 0.0
        %1176 = vmatprep.subr.mxu0 0.0
        %1177 = vmatpush1.msra.mxu0 0.0
        %1178 = vmatprep.subr.mxu0 0.0
        %1179 = vmatpush1.msra.mxu0 0.0
        %1180 = vmatprep.subr.mxu0 0.0
        %1181 = vmatpush1.msra.mxu0 0.0
        %1182 = vmatprep.subr.mxu0 0.0
        %1183 = vmatpush1.msra.mxu0 0.0
        %1184 = vmatprep.subr.mxu0 0.0
        %1185 = vmatpush1.msra.mxu0 0.0
        %1186 = vmatprep.subr.mxu0 0.0
        %1187 = vmatpush1.msra.mxu0 0.0
        %1188 = vmatprep.subr.mxu0 0.0
        %1189 = vmatpush1.msra.mxu0 0.0
        %1190 = vmatprep.subr.mxu0 0.0
        %1191 = vmatpush1.msra.mxu0 0.0
        %1192 = vmatprep.subr.mxu0 0.0
        %1193 = vmatpush1.msra.mxu0 0.0
        %1194 = vmatprep.subr.mxu0 0.0
        %1195 = vmatpush1.msra.mxu0 0.0
        %1196 = vmatprep.subr.mxu0 0.0
        %1197 = vmatpush1.msra.mxu0 0.0
        %1198 = vmatprep.subr.mxu0 0.0
        %1199 = vmatpush1.msra.mxu0 0.0
        %1200 = vmatprep.subr.mxu0 0.0
        %1201 = vmatpush1.msra.mxu0 0.0
        %1202 = vmatprep.subr.mxu0 0.0
        %1203 = vmatpush1.msra.mxu0 0.0
        %1204 = vmatprep.subr.mxu0 0.0
        %1205 = vmatpush1.msra.mxu0 0.0
        %1206 = vmatprep.subr.mxu0 0.0
        %1207 = vmatpush1.msra.mxu0 0.0
        %1208 = vmatprep.subr.mxu0 0.0
        %1209 = vmatpush1.msra.mxu0 0.0
        %1210 = vmatprep.subr.mxu0 0.0
        %1211 = vmatpush1.msra.mxu0 0.0
        %1212 = vmatprep.subr.mxu0 0.0
        %1213 = vmatpush1.msra.mxu0 0.0
        %1214 = vmatprep.subr.mxu0 0.0
        %1215 = vmatpush1.msra.mxu0 0.0
        %1216 = vmatprep.subr.mxu0 0.0
        %1217 = vmatpush1.msra.mxu0 0.0
        %1218 = vmatprep.subr.mxu0 0.0
        %1219 = vmatpush1.msra.mxu0 0.0
        %1220 = vmatprep.subr.mxu0 0.0
        %1221 = vmatpush1.msra.mxu0 0.0
        %1222 = vmatprep.subr.mxu0 0.0
        %1223 = vmatpush1.msra.mxu0 0.0
        %1224 = vmatprep.mubr.f32.mxu0 0.0
        %1225 = vmatmul.mubr.f32.gmra.mrb[0].mxu0 %v1155
        %v1226 = vpop.f32.mrb[0].mxu0
        %v1227 = vadd.f32 %v1146, %v1226
        %v1228 = vpop.f32.mrb[0].mxu0
        %1229 = vmatprep.mubr.f32.mxu0 0.0
        %1230 = vmatmul.mubr.f32.gmra.mrb[0].mxu0 %v1158
        %v1231 = vpop.f32.mrb[0].mxu0
        %v1232 = vadd.f32 %v1151, %v1231
        %v1233 = vpop.f32.mrb[0].mxu0
        %1234 = vdwg.mxu0
        %v1235 = vld [vmem:[#allocation2 + $0x3] sm:$0xff]
        %v1236 = vld [vmem:[#allocation2 + $0xb] sm:$0xff]
        %v1238 = vsel %vm1062, %v1235, 0
        %v1241 = vsel %vm1062, %v1236, 0
        %1243 = vmatprep.subr.mxu0 0.0
        %1244 = vmatpush1.msra.mxu0 %v435
        %1245 = vmatprep.subr.mxu0 0.0
        %1246 = vmatpush1.msra.mxu0 %v436
        %1247 = vmatprep.subr.mxu0 0.0
        %1248 = vmatpush1.msra.mxu0 %v437
        %1249 = vmatprep.subr.mxu0 0.0
        %1250 = vmatpush1.msra.mxu0 %v438
        %1251 = vmatprep.subr.mxu0 0.0
        %1252 = vmatpush1.msra.mxu0 %v439
        %1253 = vmatprep.subr.mxu0 0.0
        %1254 = vmatpush1.msra.mxu0 %v440
        %1255 = vmatprep.subr.mxu0 0.0
        %1256 = vmatpush1.msra.mxu0 0.0
        %1257 = vmatprep.subr.mxu0 0.0
        %1258 = vmatpush1.msra.mxu0 0.0
        %1259 = vmatprep.subr.mxu0 0.0
        %1260 = vmatpush1.msra.mxu0 0.0
        %1261 = vmatprep.subr.mxu0 0.0
        %1262 = vmatpush1.msra.mxu0 0.0
        %1263 = vmatprep.subr.mxu0 0.0
        %1264 = vmatpush1.msra.mxu0 0.0
        %1265 = vmatprep.subr.mxu0 0.0
        %1266 = vmatpush1.msra.mxu0 0.0
        %1267 = vmatprep.subr.mxu0 0.0
        %1268 = vmatpush1.msra.mxu0 0.0
        %1269 = vmatprep.subr.mxu0 0.0
        %1270 = vmatpush1.msra.mxu0 0.0
        %1271 = vmatprep.subr.mxu0 0.0
        %1272 = vmatpush1.msra.mxu0 0.0
        %1273 = vmatprep.subr.mxu0 0.0
        %1274 = vmatpush1.msra.mxu0 0.0
        %1275 = vmatprep.subr.mxu0 0.0
        %1276 = vmatpush1.msra.mxu0 0.0
        %1277 = vmatprep.subr.mxu0 0.0
        %1278 = vmatpush1.msra.mxu0 0.0
        %1279 = vmatprep.subr.mxu0 0.0
        %1280 = vmatpush1.msra.mxu0 0.0
        %1281 = vmatprep.subr.mxu0 0.0
        %1282 = vmatpush1.msra.mxu0 0.0
        %1283 = vmatprep.subr.mxu0 0.0
        %1284 = vmatpush1.msra.mxu0 0.0
        %1285 = vmatprep.subr.mxu0 0.0
        %1286 = vmatpush1.msra.mxu0 0.0
        %1287 = vmatprep.subr.mxu0 0.0
        %1288 = vmatpush1.msra.mxu0 0.0
        %1289 = vmatprep.subr.mxu0 0.0
        %1290 = vmatpush1.msra.mxu0 0.0
        %1291 = vmatprep.subr.mxu0 0.0
        %1292 = vmatpush1.msra.mxu0 0.0
        %1293 = vmatprep.subr.mxu0 0.0
        %1294 = vmatpush1.msra.mxu0 0.0
        %1295 = vmatprep.subr.mxu0 0.0
        %1296 = vmatpush1.msra.mxu0 0.0
        %1297 = vmatprep.subr.mxu0 0.0
        %1298 = vmatpush1.msra.mxu0 0.0
        %1299 = vmatprep.subr.mxu0 0.0
        %1300 = vmatpush1.msra.mxu0 0.0
        %1301 = vmatprep.subr.mxu0 0.0
        %1302 = vmatpush1.msra.mxu0 0.0
        %1303 = vmatprep.subr.mxu0 0.0
        %1304 = vmatpush1.msra.mxu0 0.0
        %1305 = vmatprep.subr.mxu0 0.0
        %1306 = vmatpush1.msra.mxu0 0.0
        %1307 = vmatprep.mubr.f32.mxu0 0.0
        %1308 = vmatmul.mubr.f32.gmra.mrb[0].mxu0 %v1238
        %v1309 = vpop.f32.mrb[0].mxu0
        %v1310 = vadd.f32 0.0, %v1309
        %v1311 = vpop.f32.mrb[0].mxu0
        %1312 = vmatprep.mubr.f32.mxu0 0.0
        %1313 = vmatmul.mubr.f32.gmra.mrb[0].mxu0 %v1241
        %v1314 = vpop.f32.mrb[0].mxu0
        %v1315 = vadd.f32 0.0, %v1314
        %v1316 = vpop.f32.mrb[0].mxu0
        %1317 = vdwg.mxu0
        %v1319 = vsel %vm1062, %v1069, 0
        %v1322 = vsel %vm1062, %v1070, 0
        %1324 = vmatprep.subr.mxu0 0.0
        %1325 = vmatpush1.msra.mxu0 %v423
        %1326 = vmatprep.subr.mxu0 0.0
        %1327 = vmatpush1.msra.mxu0 %v424
        %1328 = vmatprep.subr.mxu0 0.0
        %1329 = vmatpush1.msra.mxu0 %v425
        %1330 = vmatprep.subr.mxu0 0.0
        %1331 = vmatpush1.msra.mxu0 %v426
        %1332 = vmatprep.subr.mxu0 0.0
        %1333 = vmatpush1.msra.mxu0 %v427
        %1334 = vmatprep.subr.mxu0 0.0
        %1335 = vmatpush1.msra.mxu0 %v428
        %1336 = vmatprep.subr.mxu0 0.0
        %1337 = vmatpush1.msra.mxu0 0.0
        %1338 = vmatprep.subr.mxu0 0.0
        %1339 = vmatpush1.msra.mxu0 0.0
        %1340 = vmatprep.subr.mxu0 0.0
        %1341 = vmatpush1.msra.mxu0 0.0
        %1342 = vmatprep.subr.mxu0 0.0
        %1343 = vmatpush1.msra.mxu0 0.0
        %1344 = vmatprep.subr.mxu0 0.0
        %1345 = vmatpush1.msra.mxu0 0.0
        %1346 = vmatprep.subr.mxu0 0.0
        %1347 = vmatpush1.msra.mxu0 0.0
        %1348 = vmatprep.subr.mxu0 0.0
        %1349 = vmatpush1.msra.mxu0 0.0
        %1350 = vmatprep.subr.mxu0 0.0
        %1351 = vmatpush1.msra.mxu0 0.0
        %1352 = vmatprep.subr.mxu0 0.0
        %1353 = vmatpush1.msra.mxu0 0.0
        %1354 = vmatprep.subr.mxu0 0.0
        %1355 = vmatpush1.msra.mxu0 0.0
        %1356 = vmatprep.subr.mxu0 0.0
        %1357 = vmatpush1.msra.mxu0 0.0
        %1358 = vmatprep.subr.mxu0 0.0
        %1359 = vmatpush1.msra.mxu0 0.0
        %1360 = vmatprep.subr.mxu0 0.0
        %1361 = vmatpush1.msra.mxu0 0.0
        %1362 = vmatprep.subr.mxu0 0.0
        %1363 = vmatpush1.msra.mxu0 0.0
        %1364 = vmatprep.subr.mxu0 0.0
        %1365 = vmatpush1.msra.mxu0 0.0
        %1366 = vmatprep.subr.mxu0 0.0
        %1367 = vmatpush1.msra.mxu0 0.0
        %1368 = vmatprep.subr.mxu0 0.0
        %1369 = vmatpush1.msra.mxu0 0.0
        %1370 = vmatprep.subr.mxu0 0.0
        %1371 = vmatpush1.msra.mxu0 0.0
        %1372 = vmatprep.subr.mxu0 0.0
        %1373 = vmatpush1.msra.mxu0 0.0
        %1374 = vmatprep.subr.mxu0 0.0
        %1375 = vmatpush1.msra.mxu0 0.0
        %1376 = vmatprep.subr.mxu0 0.0
        %1377 = vmatpush1.msra.mxu0 0.0
        %1378 = vmatprep.subr.mxu0 0.0
        %1379 = vmatpush1.msra.mxu0 0.0
        %1380 = vmatprep.subr.mxu0 0.0
        %1381 = vmatpush1.msra.mxu0 0.0
        %1382 = vmatprep.subr.mxu0 0.0
        %1383 = vmatpush1.msra.mxu0 0.0
        %1384 = vmatprep.subr.mxu0 0.0
        %1385 = vmatpush1.msra.mxu0 0.0
        %1386 = vmatprep.subr.mxu0 0.0
        %1387 = vmatpush1.msra.mxu0 0.0
        %1388 = vmatprep.mubr.f32.mxu0 0.0
        %1389 = vmatmul.mubr.f32.gmra.mrb[0].mxu0 %v1319
        %v1390 = vpop.f32.mrb[0].mxu0
        %v1391 = vadd.f32 %v1310, %v1390
        %v1392 = vpop.f32.mrb[0].mxu0
        %1393 = vmatprep.mubr.f32.mxu0 0.0
        %1394 = vmatmul.mubr.f32.gmra.mrb[0].mxu0 %v1322
        %v1395 = vpop.f32.mrb[0].mxu0
        %v1396 = vadd.f32 %v1315, %v1395
        %v1397 = vpop.f32.mrb[0].mxu0
        %1398 = vdwg.mxu0
        %v1399 = vld [vmem:[#allocation2 + $0x4] sm:$0xff]
        %v1400 = vld [vmem:[#allocation2 + $0xc] sm:$0xff]
        %v1402 = vsel %vm1062, %v1399, 0
        %v1405 = vsel %vm1062, %v1400, 0
        %1407 = vmatprep.subr.mxu0 0.0
        %1408 = vmatpush1.msra.mxu0 %v441
        %1409 = vmatprep.subr.mxu0 0.0
        %1410 = vmatpush1.msra.mxu0 %v442
        %1411 = vmatprep.subr.mxu0 0.0
        %1412 = vmatpush1.msra.mxu0 %v443
        %1413 = vmatprep.subr.mxu0 0.0
        %1414 = vmatpush1.msra.mxu0 %v444
        %1415 = vmatprep.subr.mxu0 0.0
        %1416 = vmatpush1.msra.mxu0 %v445
        %1417 = vmatprep.subr.mxu0 0.0
        %1418 = vmatpush1.msra.mxu0 %v446
        %1419 = vmatprep.subr.mxu0 0.0
        %1420 = vmatpush1.msra.mxu0 0.0
        %1421 = vmatprep.subr.mxu0 0.0
        %1422 = vmatpush1.msra.mxu0 0.0
        %1423 = vmatprep.subr.mxu0 0.0
        %1424 = vmatpush1.msra.mxu0 0.0
        %1425 = vmatprep.subr.mxu0 0.0
        %1426 = vmatpush1.msra.mxu0 0.0
        %1427 = vmatprep.subr.mxu0 0.0
        %1428 = vmatpush1.msra.mxu0 0.0
        %1429 = vmatprep.subr.mxu0 0.0
        %1430 = vmatpush1.msra.mxu0 0.0
        %1431 = vmatprep.subr.mxu0 0.0
        %1432 = vmatpush1.msra.mxu0 0.0
        %1433 = vmatprep.subr.mxu0 0.0
        %1434 = vmatpush1.msra.mxu0 0.0
        %1435 = vmatprep.subr.mxu0 0.0
        %1436 = vmatpush1.msra.mxu0 0.0
        %1437 = vmatprep.subr.mxu0 0.0
        %1438 = vmatpush1.msra.mxu0 0.0
        %1439 = vmatprep.subr.mxu0 0.0
        %1440 = vmatpush1.msra.mxu0 0.0
        %1441 = vmatprep.subr.mxu0 0.0
        %1442 = vmatpush1.msra.mxu0 0.0
        %1443 = vmatprep.subr.mxu0 0.0
        %1444 = vmatpush1.msra.mxu0 0.0
        %1445 = vmatprep.subr.mxu0 0.0
        %1446 = vmatpush1.msra.mxu0 0.0
        %1447 = vmatprep.subr.mxu0 0.0
        %1448 = vmatpush1.msra.mxu0 0.0
        %1449 = vmatprep.subr.mxu0 0.0
        %1450 = vmatpush1.msra.mxu0 0.0
        %1451 = vmatprep.subr.mxu0 0.0
        %1452 = vmatpush1.msra.mxu0 0.0
        %1453 = vmatprep.subr.mxu0 0.0
        %1454 = vmatpush1.msra.mxu0 0.0
        %1455 = vmatprep.subr.mxu0 0.0
        %1456 = vmatpush1.msra.mxu0 0.0
        %1457 = vmatprep.subr.mxu0 0.0
        %1458 = vmatpush1.msra.mxu0 0.0
        %1459 = vmatprep.subr.mxu0 0.0
        %1460 = vmatpush1.msra.mxu0 0.0
        %1461 = vmatprep.subr.mxu0 0.0
        %1462 = vmatpush1.msra.mxu0 0.0
        %1463 = vmatprep.subr.mxu0 0.0
        %1464 = vmatpush1.msra.mxu0 0.0
        %1465 = vmatprep.subr.mxu0 0.0
        %1466 = vmatpush1.msra.mxu0 0.0
        %1467 = vmatprep.subr.mxu0 0.0
        %1468 = vmatpush1.msra.mxu0 0.0
        %1469 = vmatprep.subr.mxu0 0.0
        %1470 = vmatpush1.msra.mxu0 0.0
        %1471 = vmatprep.mubr.f32.mxu0 0.0
        %1472 = vmatmul.mubr.f32.gmra.mrb[0].mxu0 %v1402
        %v1473 = vpop.f32.mrb[0].mxu0
        %v1474 = vadd.f32 0.0, %v1473
        %v1475 = vpop.f32.mrb[0].mxu0
        %1476 = vmatprep.mubr.f32.mxu0 0.0
        %1477 = vmatmul.mubr.f32.gmra.mrb[0].mxu0 %v1405
        %v1478 = vpop.f32.mrb[0].mxu0
        %v1479 = vadd.f32 0.0, %v1478
        %v1480 = vpop.f32.mrb[0].mxu0
        %1481 = vdwg.mxu0
        %v1482 = vadd.f32 %v1227, %v1474
        %v1483 = vadd.f32 %v1232, %v1479
        %v1484 = vld [vmem:[#allocation2 + $0x5] sm:$0xff]
        %v1485 = vld [vmem:[#allocation2 + $0xd] sm:$0xff]
        %v1487 = vsel %vm1062, %v1484, 0
        %v1490 = vsel %vm1062, %v1485, 0
        %1492 = vmatprep.subr.mxu0 0.0
        %1493 = vmatpush1.msra.mxu0 %v447
        %1494 = vmatprep.subr.mxu0 0.0
        %1495 = vmatpush1.msra.mxu0 %v448
        %1496 = vmatprep.subr.mxu0 0.0
        %1497 = vmatpush1.msra.mxu0 %v449
        %1498 = vmatprep.subr.mxu0 0.0
        %1499 = vmatpush1.msra.mxu0 %v450
        %1500 = vmatprep.subr.mxu0 0.0
        %1501 = vmatpush1.msra.mxu0 %v451
        %1502 = vmatprep.subr.mxu0 0.0
        %1503 = vmatpush1.msra.mxu0 %v452
        %1504 = vmatprep.subr.mxu0 0.0
        %1505 = vmatpush1.msra.mxu0 0.0
        %1506 = vmatprep.subr.mxu0 0.0
        %1507 = vmatpush1.msra.mxu0 0.0
        %1508 = vmatprep.subr.mxu0 0.0
        %1509 = vmatpush1.msra.mxu0 0.0
        %1510 = vmatprep.subr.mxu0 0.0
        %1511 = vmatpush1.msra.mxu0 0.0
        %1512 = vmatprep.subr.mxu0 0.0
        %1513 = vmatpush1.msra.mxu0 0.0
        %1514 = vmatprep.subr.mxu0 0.0
        %1515 = vmatpush1.msra.mxu0 0.0
        %1516 = vmatprep.subr.mxu0 0.0
        %1517 = vmatpush1.msra.mxu0 0.0
        %1518 = vmatprep.subr.mxu0 0.0
        %1519 = vmatpush1.msra.mxu0 0.0
        %1520 = vmatprep.subr.mxu0 0.0
        %1521 = vmatpush1.msra.mxu0 0.0
        %1522 = vmatprep.subr.mxu0 0.0
        %1523 = vmatpush1.msra.mxu0 0.0
        %1524 = vmatprep.subr.mxu0 0.0
        %1525 = vmatpush1.msra.mxu0 0.0
        %1526 = vmatprep.subr.mxu0 0.0
        %1527 = vmatpush1.msra.mxu0 0.0
        %1528 = vmatprep.subr.mxu0 0.0
        %1529 = vmatpush1.msra.mxu0 0.0
        %1530 = vmatprep.subr.mxu0 0.0
        %1531 = vmatpush1.msra.mxu0 0.0
        %1532 = vmatprep.subr.mxu0 0.0
        %1533 = vmatpush1.msra.mxu0 0.0
        %1534 = vmatprep.subr.mxu0 0.0
        %1535 = vmatpush1.msra.mxu0 0.0
        %1536 = vmatprep.subr.mxu0 0.0
        %1537 = vmatpush1.msra.mxu0 0.0
        %1538 = vmatprep.subr.mxu0 0.0
        %1539 = vmatpush1.msra.mxu0 0.0
        %1540 = vmatprep.subr.mxu0 0.0
        %1541 = vmatpush1.msra.mxu0 0.0
        %1542 = vmatprep.subr.mxu0 0.0
        %1543 = vmatpush1.msra.mxu0 0.0
        %1544 = vmatprep.subr.mxu0 0.0
        %1545 = vmatpush1.msra.mxu0 0.0
        %1546 = vmatprep.subr.mxu0 0.0
        %1547 = vmatpush1.msra.mxu0 0.0
        %1548 = vmatprep.subr.mxu0 0.0
        %1549 = vmatpush1.msra.mxu0 0.0
        %1550 = vmatprep.subr.mxu0 0.0
        %1551 = vmatpush1.msra.mxu0 0.0
        %1552 = vmatprep.subr.mxu0 0.0
        %1553 = vmatpush1.msra.mxu0 0.0
        %1554 = vmatprep.subr.mxu0 0.0
        %1555 = vmatpush1.msra.mxu0 0.0
        %1556 = vmatprep.mubr.f32.mxu0 0.0
        %1557 = vmatmul.mubr.f32.gmra.mrb[0].mxu0 %v1487
        %v1558 = vpop.f32.mrb[0].mxu0
        %v1559 = vadd.f32 0.0, %v1558
        %v1560 = vpop.f32.mrb[0].mxu0
        %1561 = vmatprep.mubr.f32.mxu0 0.0
        %1562 = vmatmul.mubr.f32.gmra.mrb[0].mxu0 %v1490
        %v1563 = vpop.f32.mrb[0].mxu0
        %v1564 = vadd.f32 0.0, %v1563
        %v1565 = vpop.f32.mrb[0].mxu0
        %1566 = vdwg.mxu0
        %v1567 = vadd.f32 %v1391, %v1559
        %v1568 = vadd.f32 %v1396, %v1564
        %v1569 = vld [vmem:[#allocation2 + $0x6] sm:$0xff]
        %v1570 = vld [vmem:[#allocation2 + $0xe] sm:$0xff]
        %v1572 = vsel %vm1062, %v1569, 0
        %v1575 = vsel %vm1062, %v1570, 0
        %1577 = vmatprep.subr.mxu0 0.0
        %1578 = vmatpush1.msra.mxu0 %v453
        %1579 = vmatprep.subr.mxu0 0.0
        %1580 = vmatpush1.msra.mxu0 %v454
        %1581 = vmatprep.subr.mxu0 0.0
        %1582 = vmatpush1.msra.mxu0 %v455
        %1583 = vmatprep.subr.mxu0 0.0
        %1584 = vmatpush1.msra.mxu0 %v456
        %1585 = vmatprep.subr.mxu0 0.0
        %1586 = vmatpush1.msra.mxu0 %v457
        %1587 = vmatprep.subr.mxu0 0.0
        %1588 = vmatpush1.msra.mxu0 %v458
        %1589 = vmatprep.subr.mxu0 0.0
        %1590 = vmatpush1.msra.mxu0 0.0
        %1591 = vmatprep.subr.mxu0 0.0
        %1592 = vmatpush1.msra.mxu0 0.0
        %1593 = vmatprep.subr.mxu0 0.0
        %1594 = vmatpush1.msra.mxu0 0.0
        %1595 = vmatprep.subr.mxu0 0.0
        %1596 = vmatpush1.msra.mxu0 0.0
        %1597 = vmatprep.subr.mxu0 0.0
        %1598 = vmatpush1.msra.mxu0 0.0
        %1599 = vmatprep.subr.mxu0 0.0
        %1600 = vmatpush1.msra.mxu0 0.0
        %1601 = vmatprep.subr.mxu0 0.0
        %1602 = vmatpush1.msra.mxu0 0.0
        %1603 = vmatprep.subr.mxu0 0.0
        %1604 = vmatpush1.msra.mxu0 0.0
        %1605 = vmatprep.subr.mxu0 0.0
        %1606 = vmatpush1.msra.mxu0 0.0
        %1607 = vmatprep.subr.mxu0 0.0
        %1608 = vmatpush1.msra.mxu0 0.0
        %1609 = vmatprep.subr.mxu0 0.0
        %1610 = vmatpush1.msra.mxu0 0.0
        %1611 = vmatprep.subr.mxu0 0.0
        %1612 = vmatpush1.msra.mxu0 0.0
        %1613 = vmatprep.subr.mxu0 0.0
        %1614 = vmatpush1.msra.mxu0 0.0
        %1615 = vmatprep.subr.mxu0 0.0
        %1616 = vmatpush1.msra.mxu0 0.0
        %1617 = vmatprep.subr.mxu0 0.0
        %1618 = vmatpush1.msra.mxu0 0.0
        %1619 = vmatprep.subr.mxu0 0.0
        %1620 = vmatpush1.msra.mxu0 0.0
        %1621 = vmatprep.subr.mxu0 0.0
        %1622 = vmatpush1.msra.mxu0 0.0
        %1623 = vmatprep.subr.mxu0 0.0
        %1624 = vmatpush1.msra.mxu0 0.0
        %1625 = vmatprep.subr.mxu0 0.0
        %1626 = vmatpush1.msra.mxu0 0.0
        %1627 = vmatprep.subr.mxu0 0.0
        %1628 = vmatpush1.msra.mxu0 0.0
        %1629 = vmatprep.subr.mxu0 0.0
        %1630 = vmatpush1.msra.mxu0 0.0
        %1631 = vmatprep.subr.mxu0 0.0
        %1632 = vmatpush1.msra.mxu0 0.0
        %1633 = vmatprep.subr.mxu0 0.0
        %1634 = vmatpush1.msra.mxu0 0.0
        %1635 = vmatprep.subr.mxu0 0.0
        %1636 = vmatpush1.msra.mxu0 0.0
        %1637 = vmatprep.subr.mxu0 0.0
        %1638 = vmatpush1.msra.mxu0 0.0
        %1639 = vmatprep.subr.mxu0 0.0
        %1640 = vmatpush1.msra.mxu0 0.0
        %1641 = vmatprep.mubr.f32.mxu0 0.0
        %1642 = vmatmul.mubr.f32.gmra.mrb[0].mxu0 %v1572
        %v1643 = vpop.f32.mrb[0].mxu0
        %v1644 = vadd.f32 0.0, %v1643
        %v1645 = vpop.f32.mrb[0].mxu0
        %1646 = vmatprep.mubr.f32.mxu0 0.0
        %1647 = vmatmul.mubr.f32.gmra.mrb[0].mxu0 %v1575
        %v1648 = vpop.f32.mrb[0].mxu0
        %v1649 = vadd.f32 0.0, %v1648
        %v1650 = vpop.f32.mrb[0].mxu0
        %1651 = vdwg.mxu0
        %v1652 = vadd.f32 %v1482, %v1644
        %v1653 = vadd.f32 %v1483, %v1649
        %v1654 = vadd.f32 %v1652, %v1567
        %v1655 = vadd.f32 %v1653, %v1568
        %v1656 = vsub.f32 0.0, %v1654
        %v1657 = vsub.f32 0.0, %v1655
        %v1658 = vmul.f32 %v1656, 1.442695
        %v1659 = vpow.pop %v1658
        %v1660 = vmul.f32 %v1657, 1.442695
        %v1661 = vpow.pop %v1660
        %v1662 = vadd.f32 %v1659, 1.0
        %v1663 = vadd.f32 %v1661, 1.0
        %v1664 = vrcp.pop %v1662
        %v1665 = vrcp.pop %v1663
        %v1666 = vmul.f32 %v1235, %v1664
        %v1667 = vmul.f32 %v1236, %v1665
        %1668 = vst.msk [vmem:[%s382] sm:$0xff] %vm557, %v1666
        %1669 = vst.msk [vmem:[%s382 + $0x8] sm:$0xff] %vm557, %v1667
        %1672 = vrot.lane.b32.xlu0 %v1664, 16
        %v1673 = vpop.permute.xlu0 %1672
        %1674 = vrot.lane.b32.xlu0 %v1665, 16
        %v1675 = vpop.permute.xlu0 %1674
        %v1678 = vmul.f32 %v1235, %v1673
        %v1679 = vmul.f32 %v1236, %v1675
        %1682 = vrot.lane.b32.xlu0 %v1678, 112
        %v1683 = vpop.permute.xlu0 %1682
        %1684 = vrot.lane.b32.xlu0 %v1679, 112
        %v1685 = vpop.permute.xlu0 %1684
        %s1688 = scalar_lea.vmem %s382, 16 [#allocation3]
        %1689 = vst.msk [vmem:[%s1688] sm:$0xff] %vm557, %v1683
        %1690 = vst.msk [vmem:[%s1688 + $0x8] sm:$0xff] %vm557, %v1685
        %1691 = vrot.lane.b32.xlu0 %v1664, 32
        %v1692 = vpop.permute.xlu0 %1691
        %1693 = vrot.lane.b32.xlu0 %v1665, 32
        %v1694 = vpop.permute.xlu0 %1693
        %v1697 = vmul.f32 %v1235, %v1692
        %v1698 = vmul.f32 %v1236, %v1694
        %1701 = vrot.lane.b32.xlu0 %v1697, 96
        %v1702 = vpop.permute.xlu0 %1701
        %1703 = vrot.lane.b32.xlu0 %v1698, 96
        %v1704 = vpop.permute.xlu0 %1703
        %s1707 = scalar_lea.vmem %s382, 32 [#allocation3]
        %1708 = vst.msk [vmem:[%s1707] sm:$0xff] %vm557, %v1702
        %1709 = vst.msk [vmem:[%s1707 + $0x8] sm:$0xff] %vm557, %v1704
        %s1710 = sand.u32 %s257, 1
        %s1711 = scalar_lea.sflag [#allocation4], %s1710
        %s1712 = sand.u32 %s257, 1
        %s1713 = smul.addr %s1712, 48
        %s1714 = scalar_lea.vmem [#allocation3], %s1713
        // Predicated region
        $region61: #{spatial_attention_bridge_forward.1} parent=59 // pred_check
          %p1715 = pneg %p267
        $region62: #{spatial_attention_bridge_forward.1} parent=59 // pred_check_branch
          %1717 = sbr.rel (%p1715) target = $region64
        $region63: #{spatial_attention_bridge_forward.1} parent=59 // pred_region
          %s1719 = ssub.s32 768, 768
          %1720 = vsyncadd %s1711, %s1719
          %s1721 = smul.addr %s24, 6
          %s1722 = smul.addr %s1721, 128
          %s1723 = scalar_lea.hbm %s10, %s1722
          %s1724 = sshll.u32 %s1714, 4
          %s1725 = int_to_ptr.vmem [resolvable:$true] %s1724
          %1730 = dma.vmem_to_hbm [thread:$0]  %s1725, 768, %s1723, %s1711, 128, 128, 8
        $region64: #{spatial_attention_bridge_forward.1} parent=59 // pred_fallthru
          _
      $region60: #{spatial_attention_bridge_forward.1} parent=5 // pred_fallthru
        _
      %p1731 = scmp.le.s32.totalorder 2, %s19
      // Predicated region
      $region65: #{spatial_attention_bridge_forward.1} parent=5 // pred_check
        %p1732 = pneg %p1731
      $region66: #{spatial_attention_bridge_forward.1} parent=5 // pred_check_branch
        %1734 = sbr.rel (%p1732) target = $region68
      $region67: #{spatial_attention_bridge_forward.1} parent=5 // pred_region
        %s1735 = ssub.s32 %s19, 2
        // Predicated region
        $region69: #{spatial_attention_bridge_forward.1} parent=67 // pred_check
          %p1736 = pneg %p273
        $region70: #{spatial_attention_bridge_forward.1} parent=67 // pred_check_branch
          %1738 = sbr.rel (%p1736) target = $region72
        $region71: #{spatial_attention_bridge_forward.1} parent=67 // pred_region
          %s1739 = sand.u32 %s258, 1
          %s1740 = scalar_lea.sflag [#allocation4], %s1739
          %s1741 = sand.u32 %s258, 1
          %s1742 = smul.addr %s1741, 48
          %s1743 = scalar_lea.vmem [#allocation3], %s1742
          %1744 = dma.done %s1740, 768
        $region72: #{spatial_attention_bridge_forward.1} parent=67 // pred_fallthru
          _
      $region68: #{spatial_attention_bridge_forward.1} parent=5 // pred_fallthru
        _
    $region6: #{spatial_attention_bridge_forward.1} parent=1 // loop_footer
      %s23 = sadd.s32 1, %s19
    $region7: #{spatial_attention_bridge_forward.1} parent=1 // loop_footer_branch
      %18 = sbr.rel target = $region3
    $region8: #{spatial_attention_bridge_forward.1} parent=1 // loop_exit
      _
    %1745 = vsyncpa [#allocation4], 1
    %s1746 = scalar_lea.sflag [#allocation4], 1
    %1747 = vsyncpa %s1746, 1

</llo_original>
